<compile_context>
chip_gen: v5e
topology: v5e:2x2
jax: 0.10.0
libtpu: 0.0.40
codegen_flags: <defaults>
</compile_context>

<pallas_src>
import functools

import jax
import jax.numpy as jnp
from jax.experimental import pallas as pl
from jax.experimental.pallas import tpu as pltpu


# ------------------------------- helpers ----------------------------------- #

def _round_up(x, m):
    return (x + m - 1) // m * m


def _vmem_limit_bytes():
    """Per-generation VMEM budget: physical minus headroom, capped at 100 MiB."""
    try:
        phys = int(pltpu.get_tpu_info().vmem_capacity_bytes)
    except Exception:
        phys = 64 * 1024 * 1024          # conservative (v7x-sized) fallback
    return int(min(phys - 8 * 1024 * 1024, 100 * 1024 * 1024))


def _pick_t_chunk(T, Bp, In_p, Hp, vmem_budget):
    """Largest time chunk whose working set fits the VMEM budget (cap 128)."""
    act = 2                                    # bf16 activations
    per_t = 2 * Bp * In_p * act                # x block, double-buffered
    per_t += 2 * Bp * Hp * act                 # out block, double-buffered
    per_t += Bp * 4 * Hp * 4                   # f32 gates scratch
    fixed = (In_p + Hp) * 4 * Hp * act         # single-buffered bf16 weights
    fixed += 4 * Hp * 4                        # bias
    fixed += 2 * Bp * Hp * 4                   # h/c scratch (f32)
    fixed += 2 * 2 * Bp * Hp * 4               # h/c output blocks (double-buffered)
    cap = max(1, (vmem_budget - fixed) // per_t)
    return max(1, min(T, 128, int(cap)))


# ----------------------------- Pallas kernel ------------------------------- #

def lstm_layer_kernel(x_ref, wih_ref, whh_ref, b_ref, *refs,
                      t_valid, write_outputs):
    """One grid step = one (batch_tile, time_chunk) tile of a single LSTM layer."""
    if write_outputs:
        out_ref, h_out_ref, c_out_ref, h_sc, c_sc, gates_sc = refs
    else:
        out_ref = None
        h_out_ref, c_out_ref, h_sc, c_sc, gates_sc = refs

    chunk = pl.program_id(1)

    # zero-init recurrent state at the first time chunk (PyTorch h0 = c0 = 0)
    @pl.when(chunk == 0)
    def _():
        h_sc[...] = jnp.zeros_like(h_sc)
        c_sc[...] = jnp.zeros_like(c_sc)

    t_chunk, bt, in_p = x_ref.shape            # static block shape
    h_p = whh_ref.shape[0]
    g4 = whh_ref.shape[1]                      # 4 * h_p

    # ---- hoisted input projection: one bf16 MXU matmul for the whole chunk ----
    x_flat = x_ref[...].reshape(t_chunk * bt, in_p)
    gates_in = (jnp.dot(x_flat, wih_ref[...],
                        preferred_element_type=jnp.float32)
                + b_ref[...])                               # f32 (t*bt, 4H)
    gates_sc[...] = gates_in.reshape(t_chunk, bt, g4)

    w_hh = whh_ref[...]                                     # bf16
    base_t = chunk * t_chunk

    # ---- sequential recurrence over the chunk (only h @ W_hh per step) ----
    def step(t, carry):
        h_prev, c_prev = carry                              # f32 state
        gates = gates_sc[t] + jnp.dot(h_prev.astype(w_hh.dtype), w_hh,
                                      preferred_element_type=jnp.float32)
        # gate blocks packed as (i, f, o, g): one contiguous sigmoid stream
        sig = jax.nn.sigmoid(gates[:, :3 * h_p])
        i_g = sig[:, 0 * h_p:1 * h_p]
        f_g = sig[:, 1 * h_p:2 * h_p]
        o_g = sig[:, 2 * h_p:3 * h_p]
        g_g = jnp.tanh(gates[:, 3 * h_p:4 * h_p])
        c_new = f_g * c_prev + i_g * g_g
        h_new = o_g * jnp.tanh(c_new)
        # mask padded tail timesteps (trip count stays static -> unrollable)
        keep = (base_t + t) < t_valid
        h_new = jnp.where(keep, h_new, h_prev)
        c_new = jnp.where(keep, c_new, c_prev)
        if out_ref is not None:
            out_ref[t] = h_new.astype(out_ref.dtype)        # lane-dense bf16 store
        return h_new, c_new

    h_fin, c_fin = jax.lax.fori_loop(
        0, t_chunk, step, (h_sc[...], c_sc[...]),
        unroll=min(t_chunk, 8))

    # carry state to the next time chunk
    h_sc[...] = h_fin
    c_sc[...] = c_fin

    # final-state writes only on the last time chunk
    @pl.when(chunk == pl.num_programs(1) - 1)
    def _():
        h_out_ref[...] = h_fin.astype(h_out_ref.dtype)
        c_out_ref[...] = c_fin.astype(c_out_ref.dtype)


def lstm_layer(x, w_ih, w_hh, b, *, t_valid, t_chunk, write_outputs=True,
               batch_tile=None):
    """Run one LSTM layer over the (time-padded) sequence.

    x:     (Tp, Bp, In_p) bfloat16  (Tp multiple of t_chunk, Bp mult. of 8,
                                     In_p multiple of 128)
    w_ih:  (In_p, 4*Hp)  bfloat16   gate blocks packed (i, f, o, g)
    w_hh:  (Hp,  4*Hp)   bfloat16
    b:     (1,   4*Hp)   float32    (b_ih + b_hh)
    returns (outputs (Tp,Bp,Hp) bf16 if write_outputs, h (Bp,Hp) f32, c (Bp,Hp) f32)
    """
    Tp, Bp, In_p = x.shape
    Hp = w_hh.shape[0]
    if batch_tile is None:
        # split the parallel axis across the two v7x TensorCores when possible
        batch_tile = Bp // 2 if (Bp >= 16 and Bp % 16 == 0) else Bp
    n_chunks = Tp // t_chunk
    nb = Bp // batch_tile

    kernel = functools.partial(lstm_layer_kernel, t_valid=t_valid,
                               write_outputs=write_outputs)

    out_shape = []
    out_specs = []
    if write_outputs:
        out_shape.append(jax.ShapeDtypeStruct((Tp, Bp, Hp), jnp.bfloat16))
        out_specs.append(
            pl.BlockSpec((t_chunk, batch_tile, Hp), lambda bi, t: (t, bi, 0)))
    out_shape += [jax.ShapeDtypeStruct((Bp, Hp), jnp.float32),
                  jax.ShapeDtypeStruct((Bp, Hp), jnp.float32)]
    out_specs += [pl.BlockSpec((batch_tile, Hp), lambda bi, t: (bi, 0)),
                  pl.BlockSpec((batch_tile, Hp), lambda bi, t: (bi, 0))]

    res = pl.pallas_call(
        kernel,
        out_shape=tuple(out_shape),
        grid_spec=pltpu.PrefetchScalarGridSpec(
            num_scalar_prefetch=0,
            grid=(nb, n_chunks),
            in_specs=[
                pl.BlockSpec((t_chunk, batch_tile, In_p),
                             lambda bi, t: (t, bi, 0)),
                # constant-index weights: single-buffer to halve weight VMEM
                pl.BlockSpec((In_p, 4 * Hp), lambda bi, t: (0, 0),
                             pipeline_mode=pl.Buffered(1)),
                pl.BlockSpec((Hp, 4 * Hp), lambda bi, t: (0, 0),
                             pipeline_mode=pl.Buffered(1)),
                pl.BlockSpec((1, 4 * Hp), lambda bi, t: (0, 0),
                             pipeline_mode=pl.Buffered(1)),
            ],
            out_specs=out_specs,
            scratch_shapes=[
                pltpu.VMEM((batch_tile, Hp), jnp.float32),               # h state
                pltpu.VMEM((batch_tile, Hp), jnp.float32),               # c state
                pltpu.VMEM((t_chunk, batch_tile, 4 * Hp), jnp.float32),  # gates
            ],
        ),
        compiler_params=pltpu.CompilerParams(
            dimension_semantics=("parallel", "arbitrary"),  # batch || cores,
            vmem_limit_bytes=_vmem_limit_bytes()),          # time sequential
    )(x, w_ih, w_hh, b)

    if write_outputs:
        return res[0], res[1], res[2]
    return res[0], res[1]


# ----------------------------- parameter prep ------------------------------ #

def init_encoder_params(key, input_dim, embedding_dim, hidden_dim, n_layers):
    """Deterministic init matching the shapes of the PyTorch module."""
    keys = jax.random.split(key, 1 + 4 * n_layers)
    H = hidden_dim
    scale = 1.0 / jnp.sqrt(H)
    params = {
        "embedding": jax.random.normal(keys[0], (input_dim, embedding_dim),
                                       jnp.float32) * 0.1,
        "layers": [],
    }
    k = 1
    for l in range(n_layers):
        in_dim = embedding_dim if l == 0 else hidden_dim
        w_ih = jax.random.uniform(keys[k], (in_dim, 4 * H), jnp.float32,
                                  -scale, scale); k += 1
        w_hh = jax.random.uniform(keys[k], (H, 4 * H), jnp.float32,
                                  -scale, scale); k += 1
        b_ih = jax.random.uniform(keys[k], (4 * H,), jnp.float32,
                                  -scale, scale); k += 1
        b_hh = jax.random.uniform(keys[k], (4 * H,), jnp.float32,
                                  -scale, scale); k += 1
        params["layers"].append(
            {"w_ih": w_ih, "w_hh": w_hh, "b": (b_ih + b_hh)[None, :]})
    return params


# gate blocks are re-packed from PyTorch order (i, f, g, o) to (i, f, o, g)
# so the three sigmoids act on one contiguous slice inside the kernel.
_GATE_PERM = (0, 1, 3, 2)   # dest block g takes source block _GATE_PERM[g]


def _pad_gate_weights(w, in_dim_pad, H, Hp, dtype):
    """Pad (In, 4H) -> (in_dim_pad, 4*Hp), re-packing gate order to (i,f,o,g)."""
    In = w.shape[0]
    w_p = jnp.zeros((in_dim_pad, 4 * Hp), jnp.float32)
    for g_dst, g_src in enumerate(_GATE_PERM):
        w_p = w_p.at[:In, g_dst * Hp:g_dst * Hp + H].set(
            w[:, g_src * H:(g_src + 1) * H])
    return w_p.astype(dtype)


def prepare_padded_params(params, embedding_dim, hidden_dim):
    """Pad weights to lane-dense shapes; bf16 weights, f32 bias (exact zero pads)."""
    E, H = embedding_dim, hidden_dim
    Ep = _round_up(E, 128)
    Hp = _round_up(H, 128)
    layers = []
    for l, layer in enumerate(params["layers"]):
        in_pad = Ep if l == 0 else Hp
        w_ih_p = _pad_gate_weights(layer["w_ih"], in_pad, H, Hp, jnp.bfloat16)
        w_hh_p = _pad_gate_weights(layer["w_hh"], Hp, H, Hp, jnp.bfloat16)
        b_p = jnp.zeros((1, 4 * Hp), jnp.float32)
        for g_dst, g_src in enumerate(_GATE_PERM):
            b_p = b_p.at[:, g_dst * Hp:g_dst * Hp + H].set(
                layer["b"][:, g_src * H:(g_src + 1) * H])
        layers.append({"w_ih": w_ih_p, "w_hh": w_hh_p, "b": b_p})
    return {"embedding": params["embedding"], "layers": layers,
            "E": E, "H": H, "Ep": Ep, "Hp": Hp}


# ----------------------------- Encoder forward ----------------------------- #

def encoder_forward(padded_params, src):
    """src: (T, B) int32 -> (hidden, cell), each (n_layers, B, H)."""
    T, B = src.shape
    E, H = padded_params["E"], padded_params["H"]
    Ep, Hp = padded_params["Ep"], padded_params["Hp"]
    Bp = _round_up(B, 8)

    # embedding lookup (glue) + pad to (T, Bp, Ep), cast activations to bf16
    x = jnp.take(padded_params["embedding"], src, axis=0)       # (T, B, E) f32
    x = jnp.pad(x, ((0, 0), (0, Bp - B), (0, Ep - E))).astype(jnp.bfloat16)
    # dropout: identity (eval-mode semantics; deterministic)

    # choose a time chunk from the VMEM budget and pad T to a multiple of it
    t_chunk = _pick_t_chunk(T, Bp, max(Ep, Hp), Hp, _vmem_limit_bytes())
    Tp = _round_up(T, t_chunk)
    if Tp > T:
        x = jnp.pad(x, ((0, Tp - T), (0, 0), (0, 0)))

    layers = padded_params["layers"]
    n_layers = len(layers)
    hs, cs = [], []
    for li, layer in enumerate(layers):
        last = (li == n_layers - 1)
        if last:
            # last layer: sequence output is dead -> don't write it to HBM
            h, c = lstm_layer(x, layer["w_ih"], layer["w_hh"], layer["b"],
                              t_valid=T, t_chunk=t_chunk, write_outputs=False)
        else:
            x, h, c = lstm_layer(x, layer["w_ih"], layer["w_hh"], layer["b"],
                                 t_valid=T, t_chunk=t_chunk, write_outputs=True)
        hs.append(h[:B, :H])
        cs.append(c[:B, :H])
    return jnp.stack(hs, axis=0), jnp.stack(cs, axis=0)


# ------------------------------ reference ---------------------------------- #

def _lstm_layer_ref(x, w_ih, w_hh, b):
    T, B, _ = x.shape
    H = w_hh.shape[0]

    def step(carry, x_t):
        h, c = carry
        gates = x_t @ w_ih + h @ w_hh + b
        i = jax.nn.sigmoid(gates[:, 0 * H:1 * H])
        f = jax.nn.sigmoid(gates[:, 1 * H:2 * H])
        g = jnp.tanh(gates[:, 2 * H:3 * H])
        o = jax.nn.sigmoid(gates[:, 3 * H:4 * H])
        c = f * c + i * g
        h = o * jnp.tanh(c)
        return (h, c), h

    (h, c), outs = jax.lax.scan(step,
                                (jnp.zeros((B, H)), jnp.zeros((B, H))), x)
    return outs, h, c


def encoder_forward_ref(params, src):
    x = jnp.take(params["embedding"], src, axis=0)
    hs, cs = [], []
    for layer in params["layers"]:
        x, h, c = _lstm_layer_ref(x, layer["w_ih"], layer["w_hh"], layer["b"])
        hs.append(h)
        cs.append(c)
    return jnp.stack(hs, axis=0), jnp.stack(cs, axis=0)


# --------------------------------- main ------------------------------------ #

if __name__ == "__main__":
    # small, module-consistent shapes
    input_dim = 50       # vocab size
    embedding_dim = 32
    hidden_dim = 32
    n_layers = 2
    seq_len = 8
    batch = 2

    key = jax.random.PRNGKey(0)
    k_params, k_src = jax.random.split(key)

    params = init_encoder_params(k_params, input_dim, embedding_dim,
                                 hidden_dim, n_layers)
    src = jax.random.randint(k_src, (seq_len, batch), 0, input_dim,
                             dtype=jnp.int32)

    padded_params = prepare_padded_params(params, embedding_dim, hidden_dim)

    hidden, cell = encoder_forward(padded_params, src)
    hidden = jax.block_until_ready(hidden)
    cell = jax.block_until_ready(cell)

    # correctness check against a pure-JAX f32 scan reference
    # (bf16 matmul inputs / f32 accumulation -> loosened tolerance)
    h_ref, c_ref = encoder_forward_ref(params, src)
    assert hidden.shape == (n_layers, batch, hidden_dim)
    assert cell.shape == (n_layers, batch, hidden_dim)
    assert jnp.allclose(hidden, h_ref, atol=2e-2, rtol=2e-2), (
        float(jnp.max(jnp.abs(hidden - h_ref))))
    assert jnp.allclose(cell, c_ref, atol=2e-2, rtol=2e-2), (
        float(jnp.max(jnp.abs(cell - c_ref))))

    print("KERNEL_OK")
</pallas_src>

<mosaic_0001>
module attributes {stable_mosaic.version = 11 : i64} {
  func.func @lstm_layer_kernel(%arg0: i32, %arg1: i32, %arg2: memref<8x8x128xbf16, #tpu.memory_space<vmem>>, %arg3: memref<128x512xbf16, #tpu.memory_space<vmem>>, %arg4: memref<128x512xbf16, #tpu.memory_space<vmem>>, %arg5: memref<1x512xf32, #tpu.memory_space<vmem>>, %arg6: memref<8x8x128xbf16, #tpu.memory_space<vmem>>, %arg7: memref<8x128xf32, #tpu.memory_space<vmem>>, %arg8: memref<8x128xf32, #tpu.memory_space<vmem>>, %arg9: memref<8x128xf32, #tpu.memory_space<vmem>>, %arg10: memref<8x128xf32, #tpu.memory_space<vmem>>, %arg11: memref<8x8x512xf32, #tpu.memory_space<vmem>>) attributes {dimension_semantics = [#tpu.dimension_semantics<parallel>, #tpu.dimension_semantics<arbitrary>], iteration_bounds = array<i64: 1, 1>, scalar_prefetch = 0 : i64, scratch_operands = 3 : i64, tpu.core_type = #tpu.core_type<tc>, window_params = [{transform_indices = @transform_0, window_bounds = array<i64: 8, 8, 128>}, {pipeline_mode = #tpu.pipeline_mode<synchronous>, transform_indices = @transform_1, window_bounds = array<i64: 128, 512>}, {pipeline_mode = #tpu.pipeline_mode<synchronous>, transform_indices = @transform_2, window_bounds = array<i64: 128, 512>}, {pipeline_mode = #tpu.pipeline_mode<synchronous>, transform_indices = @transform_3, window_bounds = array<i64: 1, 512>}, {transform_indices = @transform_4, window_bounds = array<i64: 8, 8, 128>}, {transform_indices = @transform_5, window_bounds = array<i64: 8, 128>}, {transform_indices = @transform_6, window_bounds = array<i64: 8, 128>}]} {
    %c0_i32 = arith.constant 0 : i32
    %0 = arith.cmpi eq, %arg1, %c0_i32 : i32
    %1 = arith.extui %0 : i1 to i32
    %c0_i32_0 = arith.constant 0 : i32
    %2 = arith.cmpi ne, %1, %c0_i32_0 : i32
    scf.if %2 {
      %cst_80 = arith.constant 0.000000e+00 : f32
      %269 = vector.broadcast %cst_80 : f32 to vector<8x128xf32>
      %c0_81 = arith.constant 0 : index
      %c0_82 = arith.constant 0 : index
      %270 = vector.load %arg9[%c0_81, %c0_82] : memref<8x128xf32, #tpu.memory_space<vmem>>, vector<8x128xf32>
      tpu.vector_store %arg9[%c0_81, %c0_82], %269 {strides = array<i32>} : memref<8x128xf32, #tpu.memory_space<vmem>>, vector<8x128xf32>,
      %cst_83 = arith.constant 0.000000e+00 : f32
      %271 = vector.broadcast %cst_83 : f32 to vector<8x128xf32>
      %c0_84 = arith.constant 0 : index
      %c0_85 = arith.constant 0 : index
      %272 = vector.load %arg10[%c0_84, %c0_85] : memref<8x128xf32, #tpu.memory_space<vmem>>, vector<8x128xf32>
      tpu.vector_store %arg10[%c0_84, %c0_85], %271 {strides = array<i32>} : memref<8x128xf32, #tpu.memory_space<vmem>>, vector<8x128xf32>,
    } else {
    }
    %c0 = arith.constant 0 : index
    %c0_1 = arith.constant 0 : index
    %c0_2 = arith.constant 0 : index
    %3 = vector.load %arg2[%c0, %c0_1, %c0_2] : memref<8x8x128xbf16, #tpu.memory_space<vmem>>, vector<8x8x128xbf16>
    %4 = vector.shape_cast %3 : vector<8x8x128xbf16> to vector<64x128xbf16>
    %c0_3 = arith.constant 0 : index
    %c0_4 = arith.constant 0 : index
    %5 = vector.load %arg3[%c0_3, %c0_4] : memref<128x512xbf16, #tpu.memory_space<vmem>>, vector<128x512xbf16>
    %cst = arith.constant dense<0.000000e+00> : vector<64x512xf32>
    %6 = tpu.matmul %4, %5, %cst {dimension_numbers = #tpu.dot_dimension_numbers<[1], [0], [0], [1], [0, 0, 1, 1], [], []>} : vector<64x128xbf16>, vector<128x512xbf16>, vector<64x512xf32> -> vector<64x512xf32>
    %c0_5 = arith.constant 0 : index
    %c0_6 = arith.constant 0 : index
    %7 = vector.load %arg5[%c0_5, %c0_6] : memref<1x512xf32, #tpu.memory_space<vmem>>, vector<1x512xf32>
    %8 = vector.broadcast %7 : vector<1x512xf32> to vector<64x512xf32>
    %9 = arith.addf %6, %8 : vector<64x512xf32>
    %10 = vector.shape_cast %9 : vector<64x512xf32> to vector<8x8x512xf32>
    %c0_7 = arith.constant 0 : index
    %c0_8 = arith.constant 0 : index
    %c0_9 = arith.constant 0 : index
    %11 = vector.load %arg11[%c0_7, %c0_8, %c0_9] : memref<8x8x512xf32, #tpu.memory_space<vmem>>, vector<8x8x512xf32>
    tpu.vector_store %arg11[%c0_7, %c0_8, %c0_9], %10 {strides = array<i32>} : memref<8x8x512xf32, #tpu.memory_space<vmem>>, vector<8x8x512xf32>,
    %c0_10 = arith.constant 0 : index
    %c0_11 = arith.constant 0 : index
    %12 = vector.load %arg4[%c0_10, %c0_11] : memref<128x512xbf16, #tpu.memory_space<vmem>>, vector<128x512xbf16>
    %c8_i32 = arith.constant 8 : i32
    %13 = arith.muli %arg1, %c8_i32 : i32
    %c0_12 = arith.constant 0 : index
    %c0_13 = arith.constant 0 : index
    %14 = vector.load %arg9[%c0_12, %c0_13] : memref<8x128xf32, #tpu.memory_space<vmem>>, vector<8x128xf32>
    %c0_14 = arith.constant 0 : index
    %c0_15 = arith.constant 0 : index
    %15 = vector.load %arg10[%c0_14, %c0_15] : memref<8x128xf32, #tpu.memory_space<vmem>>, vector<8x128xf32>
    %c0_i32_16 = arith.constant 0 : i32
    %16 = arith.index_cast %c0_i32_16 : i32 to index
    %c0_17 = arith.constant 0 : index
    %c0_18 = arith.constant 0 : index
    %17 = vector.load %arg11[%16, %c0_17, %c0_18] : memref<8x8x512xf32, #tpu.memory_space<vmem>>, vector<1x8x512xf32>
    %18 = vector.shape_cast %17 : vector<1x8x512xf32> to vector<8x512xf32>
    %19 = arith.truncf %14 : vector<8x128xf32> to vector<8x128xbf16>
    %cst_19 = arith.constant dense<0.000000e+00> : vector<8x512xf32>
    %20 = tpu.matmul %19, %12, %cst_19 {dimension_numbers = #tpu.dot_dimension_numbers<[1], [0], [0], [1], [0, 0, 1, 1], [], []>} : vector<8x128xbf16>, vector<128x512xbf16>, vector<8x512xf32> -> vector<8x512xf32>
    %21 = arith.addf %18, %20 : vector<8x512xf32>
    %22 = vector.extract_strided_slice %21 {offsets = [0, 0], sizes = [8, 384], strides = [1, 1]} : vector<8x512xf32> to vector<8x384xf32>
    %23 = arith.negf %22 : vector<8x384xf32>
    %24 = math.exp %23 : vector<8x384xf32>
    %cst_20 = arith.constant 1.000000e+00 : f32
    %25 = vector.broadcast %cst_20 : f32 to vector<8x384xf32>
    %26 = arith.addf %25, %24 : vector<8x384xf32>
    %27 = arith.divf %25, %26 : vector<8x384xf32>
    %28 = vector.extract_strided_slice %27 {offsets = [0, 0], sizes = [8, 128], strides = [1, 1]} : vector<8x384xf32> to vector<8x128xf32>
    %29 = vector.extract_strided_slice %27 {offsets = [0, 128], sizes = [8, 128], strides = [1, 1]} : vector<8x384xf32> to vector<8x128xf32>
    %30 = vector.extract_strided_slice %27 {offsets = [0, 256], sizes = [8, 128], strides = [1, 1]} : vector<8x384xf32> to vector<8x128xf32>
    %31 = vector.extract_strided_slice %21 {offsets = [0, 384], sizes = [8, 128], strides = [1, 1]} : vector<8x512xf32> to vector<8x128xf32>
    %32 = math.tanh %31 : vector<8x128xf32>
    %33 = arith.mulf %29, %15 : vector<8x128xf32>
    %34 = arith.mulf %28, %32 : vector<8x128xf32>
    %35 = arith.addf %33, %34 : vector<8x128xf32>
    %36 = math.tanh %35 : vector<8x128xf32>
    %37 = arith.mulf %30, %36 : vector<8x128xf32>
    %38 = arith.addi %13, %c0_i32_16 : i32
    %c8_i32_21 = arith.constant 8 : i32
    %39 = arith.cmpi slt, %38, %c8_i32_21 : i32
    %40 = arith.select %39, %37, %14 : vector<8x128xf32>
    %41 = arith.select %39, %35, %15 : vector<8x128xf32>
    %42 = arith.truncf %40 : vector<8x128xf32> to vector<8x128xbf16>
    %43 = arith.index_cast %c0_i32_16 : i32 to index
    %c0_22 = arith.constant 0 : index
    %c0_23 = arith.constant 0 : index
    %44 = vector.load %arg6[%43, %c0_22, %c0_23] : memref<8x8x128xbf16, #tpu.memory_space<vmem>>, vector<1x8x128xbf16>
    %45 = vector.shape_cast %44 : vector<1x8x128xbf16> to vector<8x128xbf16>
    %46 = vector.shape_cast %42 : vector<8x128xbf16> to vector<1x8x128xbf16>
    tpu.vector_store %arg6[%43, %c0_22, %c0_23], %46 {strides = array<i32>} : memref<8x8x128xbf16, #tpu.memory_space<vmem>>, vector<1x8x128xbf16>,
    %c1_i32 = arith.constant 1 : i32
    %47 = arith.index_cast %c1_i32 : i32 to index
    %c0_24 = arith.constant 0 : index
    %c0_25 = arith.constant 0 : index
    %48 = vector.load %arg11[%47, %c0_24, %c0_25] : memref<8x8x512xf32, #tpu.memory_space<vmem>>, vector<1x8x512xf32>
    %49 = vector.shape_cast %48 : vector<1x8x512xf32> to vector<8x512xf32>
    %50 = arith.truncf %40 : vector<8x128xf32> to vector<8x128xbf16>
    %cst_26 = arith.constant dense<0.000000e+00> : vector<8x512xf32>
    %51 = tpu.matmul %50, %12, %cst_26 {dimension_numbers = #tpu.dot_dimension_numbers<[1], [0], [0], [1], [0, 0, 1, 1], [], []>} : vector<8x128xbf16>, vector<128x512xbf16>, vector<8x512xf32> -> vector<8x512xf32>
    %52 = arith.addf %49, %51 : vector<8x512xf32>
    %53 = vector.extract_strided_slice %52 {offsets = [0, 0], sizes = [8, 384], strides = [1, 1]} : vector<8x512xf32> to vector<8x384xf32>
    %54 = arith.negf %53 : vector<8x384xf32>
    %55 = math.exp %54 : vector<8x384xf32>
    %cst_27 = arith.constant 1.000000e+00 : f32
    %56 = vector.broadcast %cst_27 : f32 to vector<8x384xf32>
    %57 = arith.addf %56, %55 : vector<8x384xf32>
    %58 = arith.divf %56, %57 : vector<8x384xf32>
    %59 = vector.extract_strided_slice %58 {offsets = [0, 0], sizes = [8, 128], strides = [1, 1]} : vector<8x384xf32> to vector<8x128xf32>
    %60 = vector.extract_strided_slice %58 {offsets = [0, 128], sizes = [8, 128], strides = [1, 1]} : vector<8x384xf32> to vector<8x128xf32>
    %61 = vector.extract_strided_slice %58 {offsets = [0, 256], sizes = [8, 128], strides = [1, 1]} : vector<8x384xf32> to vector<8x128xf32>
    %62 = vector.extract_strided_slice %52 {offsets = [0, 384], sizes = [8, 128], strides = [1, 1]} : vector<8x512xf32> to vector<8x128xf32>
    %63 = math.tanh %62 : vector<8x128xf32>
    %64 = arith.mulf %60, %41 : vector<8x128xf32>
    %65 = arith.mulf %59, %63 : vector<8x128xf32>
    %66 = arith.addf %64, %65 : vector<8x128xf32>
    %67 = math.tanh %66 : vector<8x128xf32>
    %68 = arith.mulf %61, %67 : vector<8x128xf32>
    %69 = arith.addi %13, %c1_i32 : i32
    %c8_i32_28 = arith.constant 8 : i32
    %70 = arith.cmpi slt, %69, %c8_i32_28 : i32
    %71 = arith.select %70, %68, %40 : vector<8x128xf32>
    %72 = arith.select %70, %66, %41 : vector<8x128xf32>
    %73 = arith.truncf %71 : vector<8x128xf32> to vector<8x128xbf16>
    %74 = arith.index_cast %c1_i32 : i32 to index
    %c0_29 = arith.constant 0 : index
    %c0_30 = arith.constant 0 : index
    %75 = vector.load %arg6[%74, %c0_29, %c0_30] : memref<8x8x128xbf16, #tpu.memory_space<vmem>>, vector<1x8x128xbf16>
    %76 = vector.shape_cast %75 : vector<1x8x128xbf16> to vector<8x128xbf16>
    %77 = vector.shape_cast %73 : vector<8x128xbf16> to vector<1x8x128xbf16>
    tpu.vector_store %arg6[%74, %c0_29, %c0_30], %77 {strides = array<i32>} : memref<8x8x128xbf16, #tpu.memory_space<vmem>>, vector<1x8x128xbf16>,
    %c2_i32 = arith.constant 2 : i32
    %78 = arith.index_cast %c2_i32 : i32 to index
    %c0_31 = arith.constant 0 : index
    %c0_32 = arith.constant 0 : index
    %79 = vector.load %arg11[%78, %c0_31, %c0_32] : memref<8x8x512xf32, #tpu.memory_space<vmem>>, vector<1x8x512xf32>
    %80 = vector.shape_cast %79 : vector<1x8x512xf32> to vector<8x512xf32>
    %81 = arith.truncf %71 : vector<8x128xf32> to vector<8x128xbf16>
    %cst_33 = arith.constant dense<0.000000e+00> : vector<8x512xf32>
    %82 = tpu.matmul %81, %12, %cst_33 {dimension_numbers = #tpu.dot_dimension_numbers<[1], [0], [0], [1], [0, 0, 1, 1], [], []>} : vector<8x128xbf16>, vector<128x512xbf16>, vector<8x512xf32> -> vector<8x512xf32>
    %83 = arith.addf %80, %82 : vector<8x512xf32>
    %84 = vector.extract_strided_slice %83 {offsets = [0, 0], sizes = [8, 384], strides = [1, 1]} : vector<8x512xf32> to vector<8x384xf32>
    %85 = arith.negf %84 : vector<8x384xf32>
    %86 = math.exp %85 : vector<8x384xf32>
    %cst_34 = arith.constant 1.000000e+00 : f32
    %87 = vector.broadcast %cst_34 : f32 to vector<8x384xf32>
    %88 = arith.addf %87, %86 : vector<8x384xf32>
    %89 = arith.divf %87, %88 : vector<8x384xf32>
    %90 = vector.extract_strided_slice %89 {offsets = [0, 0], sizes = [8, 128], strides = [1, 1]} : vector<8x384xf32> to vector<8x128xf32>
    %91 = vector.extract_strided_slice %89 {offsets = [0, 128], sizes = [8, 128], strides = [1, 1]} : vector<8x384xf32> to vector<8x128xf32>
    %92 = vector.extract_strided_slice %89 {offsets = [0, 256], sizes = [8, 128], strides = [1, 1]} : vector<8x384xf32> to vector<8x128xf32>
    %93 = vector.extract_strided_slice %83 {offsets = [0, 384], sizes = [8, 128], strides = [1, 1]} : vector<8x512xf32> to vector<8x128xf32>
    %94 = math.tanh %93 : vector<8x128xf32>
    %95 = arith.mulf %91, %72 : vector<8x128xf32>
    %96 = arith.mulf %90, %94 : vector<8x128xf32>
    %97 = arith.addf %95, %96 : vector<8x128xf32>
    %98 = math.tanh %97 : vector<8x128xf32>
    %99 = arith.mulf %92, %98 : vector<8x128xf32>
    %100 = arith.addi %13, %c2_i32 : i32
    %c8_i32_35 = arith.constant 8 : i32
    %101 = arith.cmpi slt, %100, %c8_i32_35 : i32
    %102 = arith.select %101, %99, %71 : vector<8x128xf32>
    %103 = arith.select %101, %97, %72 : vector<8x128xf32>
    %104 = arith.truncf %102 : vector<8x128xf32> to vector<8x128xbf16>
    %105 = arith.index_cast %c2_i32 : i32 to index
    %c0_36 = arith.constant 0 : index
    %c0_37 = arith.constant 0 : index
    %106 = vector.load %arg6[%105, %c0_36, %c0_37] : memref<8x8x128xbf16, #tpu.memory_space<vmem>>, vector<1x8x128xbf16>
    %107 = vector.shape_cast %106 : vector<1x8x128xbf16> to vector<8x128xbf16>
    %108 = vector.shape_cast %104 : vector<8x128xbf16> to vector<1x8x128xbf16>
    tpu.vector_store %arg6[%105, %c0_36, %c0_37], %108 {strides = array<i32>} : memref<8x8x128xbf16, #tpu.memory_space<vmem>>, vector<1x8x128xbf16>,
    %c3_i32 = arith.constant 3 : i32
    %109 = arith.index_cast %c3_i32 : i32 to index
    %c0_38 = arith.constant 0 : index
    %c0_39 = arith.constant 0 : index
    %110 = vector.load %arg11[%109, %c0_38, %c0_39] : memref<8x8x512xf32, #tpu.memory_space<vmem>>, vector<1x8x512xf32>
    %111 = vector.shape_cast %110 : vector<1x8x512xf32> to vector<8x512xf32>
    %112 = arith.truncf %102 : vector<8x128xf32> to vector<8x128xbf16>
    %cst_40 = arith.constant dense<0.000000e+00> : vector<8x512xf32>
    %113 = tpu.matmul %112, %12, %cst_40 {dimension_numbers = #tpu.dot_dimension_numbers<[1], [0], [0], [1], [0, 0, 1, 1], [], []>} : vector<8x128xbf16>, vector<128x512xbf16>, vector<8x512xf32> -> vector<8x512xf32>
    %114 = arith.addf %111, %113 : vector<8x512xf32>
    %115 = vector.extract_strided_slice %114 {offsets = [0, 0], sizes = [8, 384], strides = [1, 1]} : vector<8x512xf32> to vector<8x384xf32>
    %116 = arith.negf %115 : vector<8x384xf32>
    %117 = math.exp %116 : vector<8x384xf32>
    %cst_41 = arith.constant 1.000000e+00 : f32
    %118 = vector.broadcast %cst_41 : f32 to vector<8x384xf32>
    %119 = arith.addf %118, %117 : vector<8x384xf32>
    %120 = arith.divf %118, %119 : vector<8x384xf32>
    %121 = vector.extract_strided_slice %120 {offsets = [0, 0], sizes = [8, 128], strides = [1, 1]} : vector<8x384xf32> to vector<8x128xf32>
    %122 = vector.extract_strided_slice %120 {offsets = [0, 128], sizes = [8, 128], strides = [1, 1]} : vector<8x384xf32> to vector<8x128xf32>
    %123 = vector.extract_strided_slice %120 {offsets = [0, 256], sizes = [8, 128], strides = [1, 1]} : vector<8x384xf32> to vector<8x128xf32>
    %124 = vector.extract_strided_slice %114 {offsets = [0, 384], sizes = [8, 128], strides = [1, 1]} : vector<8x512xf32> to vector<8x128xf32>
    %125 = math.tanh %124 : vector<8x128xf32>
    %126 = arith.mulf %122, %103 : vector<8x128xf32>
    %127 = arith.mulf %121, %125 : vector<8x128xf32>
    %128 = arith.addf %126, %127 : vector<8x128xf32>
    %129 = math.tanh %128 : vector<8x128xf32>
    %130 = arith.mulf %123, %129 : vector<8x128xf32>
    %131 = arith.addi %13, %c3_i32 : i32
    %c8_i32_42 = arith.constant 8 : i32
    %132 = arith.cmpi slt, %131, %c8_i32_42 : i32
    %133 = arith.select %132, %130, %102 : vector<8x128xf32>
    %134 = arith.select %132, %128, %103 : vector<8x128xf32>
    %135 = arith.truncf %133 : vector<8x128xf32> to vector<8x128xbf16>
    %136 = arith.index_cast %c3_i32 : i32 to index
    %c0_43 = arith.constant 0 : index
    %c0_44 = arith.constant 0 : index
    %137 = vector.load %arg6[%136, %c0_43, %c0_44] : memref<8x8x128xbf16, #tpu.memory_space<vmem>>, vector<1x8x128xbf16>
    %138 = vector.shape_cast %137 : vector<1x8x128xbf16> to vector<8x128xbf16>
    %139 = vector.shape_cast %135 : vector<8x128xbf16> to vector<1x8x128xbf16>
    tpu.vector_store %arg6[%136, %c0_43, %c0_44], %139 {strides = array<i32>} : memref<8x8x128xbf16, #tpu.memory_space<vmem>>, vector<1x8x128xbf16>,
    %c4_i32 = arith.constant 4 : i32
    %140 = arith.index_cast %c4_i32 : i32 to index
    %c0_45 = arith.constant 0 : index
    %c0_46 = arith.constant 0 : index
    %141 = vector.load %arg11[%140, %c0_45, %c0_46] : memref<8x8x512xf32, #tpu.memory_space<vmem>>, vector<1x8x512xf32>
    %142 = vector.shape_cast %141 : vector<1x8x512xf32> to vector<8x512xf32>
    %143 = arith.truncf %133 : vector<8x128xf32> to vector<8x128xbf16>
    %cst_47 = arith.constant dense<0.000000e+00> : vector<8x512xf32>
    %144 = tpu.matmul %143, %12, %cst_47 {dimension_numbers = #tpu.dot_dimension_numbers<[1], [0], [0], [1], [0, 0, 1, 1], [], []>} : vector<8x128xbf16>, vector<128x512xbf16>, vector<8x512xf32> -> vector<8x512xf32>
    %145 = arith.addf %142, %144 : vector<8x512xf32>
    %146 = vector.extract_strided_slice %145 {offsets = [0, 0], sizes = [8, 384], strides = [1, 1]} : vector<8x512xf32> to vector<8x384xf32>
    %147 = arith.negf %146 : vector<8x384xf32>
    %148 = math.exp %147 : vector<8x384xf32>
    %cst_48 = arith.constant 1.000000e+00 : f32
    %149 = vector.broadcast %cst_48 : f32 to vector<8x384xf32>
    %150 = arith.addf %149, %148 : vector<8x384xf32>
    %151 = arith.divf %149, %150 : vector<8x384xf32>
    %152 = vector.extract_strided_slice %151 {offsets = [0, 0], sizes = [8, 128], strides = [1, 1]} : vector<8x384xf32> to vector<8x128xf32>
    %153 = vector.extract_strided_slice %151 {offsets = [0, 128], sizes = [8, 128], strides = [1, 1]} : vector<8x384xf32> to vector<8x128xf32>
    %154 = vector.extract_strided_slice %151 {offsets = [0, 256], sizes = [8, 128], strides = [1, 1]} : vector<8x384xf32> to vector<8x128xf32>
    %155 = vector.extract_strided_slice %145 {offsets = [0, 384], sizes = [8, 128], strides = [1, 1]} : vector<8x512xf32> to vector<8x128xf32>
    %156 = math.tanh %155 : vector<8x128xf32>
    %157 = arith.mulf %153, %134 : vector<8x128xf32>
    %158 = arith.mulf %152, %156 : vector<8x128xf32>
    %159 = arith.addf %157, %158 : vector<8x128xf32>
    %160 = math.tanh %159 : vector<8x128xf32>
    %161 = arith.mulf %154, %160 : vector<8x128xf32>
    %162 = arith.addi %13, %c4_i32 : i32
    %c8_i32_49 = arith.constant 8 : i32
    %163 = arith.cmpi slt, %162, %c8_i32_49 : i32
    %164 = arith.select %163, %161, %133 : vector<8x128xf32>
    %165 = arith.select %163, %159, %134 : vector<8x128xf32>
    %166 = arith.truncf %164 : vector<8x128xf32> to vector<8x128xbf16>
    %167 = arith.index_cast %c4_i32 : i32 to index
    %c0_50 = arith.constant 0 : index
    %c0_51 = arith.constant 0 : index
    %168 = vector.load %arg6[%167, %c0_50, %c0_51] : memref<8x8x128xbf16, #tpu.memory_space<vmem>>, vector<1x8x128xbf16>
    %169 = vector.shape_cast %168 : vector<1x8x128xbf16> to vector<8x128xbf16>
    %170 = vector.shape_cast %166 : vector<8x128xbf16> to vector<1x8x128xbf16>
    tpu.vector_store %arg6[%167, %c0_50, %c0_51], %170 {strides = array<i32>} : memref<8x8x128xbf16, #tpu.memory_space<vmem>>, vector<1x8x128xbf16>,
    %c5_i32 = arith.constant 5 : i32
    %171 = arith.index_cast %c5_i32 : i32 to index
    %c0_52 = arith.constant 0 : index
    %c0_53 = arith.constant 0 : index
    %172 = vector.load %arg11[%171, %c0_52, %c0_53] : memref<8x8x512xf32, #tpu.memory_space<vmem>>, vector<1x8x512xf32>
    %173 = vector.shape_cast %172 : vector<1x8x512xf32> to vector<8x512xf32>
    %174 = arith.truncf %164 : vector<8x128xf32> to vector<8x128xbf16>
    %cst_54 = arith.constant dense<0.000000e+00> : vector<8x512xf32>
    %175 = tpu.matmul %174, %12, %cst_54 {dimension_numbers = #tpu.dot_dimension_numbers<[1], [0], [0], [1], [0, 0, 1, 1], [], []>} : vector<8x128xbf16>, vector<128x512xbf16>, vector<8x512xf32> -> vector<8x512xf32>
    %176 = arith.addf %173, %175 : vector<8x512xf32>
    %177 = vector.extract_strided_slice %176 {offsets = [0, 0], sizes = [8, 384], strides = [1, 1]} : vector<8x512xf32> to vector<8x384xf32>
    %178 = arith.negf %177 : vector<8x384xf32>
    %179 = math.exp %178 : vector<8x384xf32>
    %cst_55 = arith.constant 1.000000e+00 : f32
    %180 = vector.broadcast %cst_55 : f32 to vector<8x384xf32>
    %181 = arith.addf %180, %179 : vector<8x384xf32>
    %182 = arith.divf %180, %181 : vector<8x384xf32>
    %183 = vector.extract_strided_slice %182 {offsets = [0, 0], sizes = [8, 128], strides = [1, 1]} : vector<8x384xf32> to vector<8x128xf32>
    %184 = vector.extract_strided_slice %182 {offsets = [0, 128], sizes = [8, 128], strides = [1, 1]} : vector<8x384xf32> to vector<8x128xf32>
    %185 = vector.extract_strided_slice %182 {offsets = [0, 256], sizes = [8, 128], strides = [1, 1]} : vector<8x384xf32> to vector<8x128xf32>
    %186 = vector.extract_strided_slice %176 {offsets = [0, 384], sizes = [8, 128], strides = [1, 1]} : vector<8x512xf32> to vector<8x128xf32>
    %187 = math.tanh %186 : vector<8x128xf32>
    %188 = arith.mulf %184, %165 : vector<8x128xf32>
    %189 = arith.mulf %183, %187 : vector<8x128xf32>
    %190 = arith.addf %188, %189 : vector<8x128xf32>
    %191 = math.tanh %190 : vector<8x128xf32>
    %192 = arith.mulf %185, %191 : vector<8x128xf32>
    %193 = arith.addi %13, %c5_i32 : i32
    %c8_i32_56 = arith.constant 8 : i32
    %194 = arith.cmpi slt, %193, %c8_i32_56 : i32
    %195 = arith.select %194, %192, %164 : vector<8x128xf32>
    %196 = arith.select %194, %190, %165 : vector<8x128xf32>
    %197 = arith.truncf %195 : vector<8x128xf32> to vector<8x128xbf16>
    %198 = arith.index_cast %c5_i32 : i32 to index
    %c0_57 = arith.constant 0 : index
    %c0_58 = arith.constant 0 : index
    %199 = vector.load %arg6[%198, %c0_57, %c0_58] : memref<8x8x128xbf16, #tpu.memory_space<vmem>>, vector<1x8x128xbf16>
    %200 = vector.shape_cast %199 : vector<1x8x128xbf16> to vector<8x128xbf16>
    %201 = vector.shape_cast %197 : vector<8x128xbf16> to vector<1x8x128xbf16>
    tpu.vector_store %arg6[%198, %c0_57, %c0_58], %201 {strides = array<i32>} : memref<8x8x128xbf16, #tpu.memory_space<vmem>>, vector<1x8x128xbf16>,
    %c6_i32 = arith.constant 6 : i32
    %202 = arith.index_cast %c6_i32 : i32 to index
    %c0_59 = arith.constant 0 : index
    %c0_60 = arith.constant 0 : index
    %203 = vector.load %arg11[%202, %c0_59, %c0_60] : memref<8x8x512xf32, #tpu.memory_space<vmem>>, vector<1x8x512xf32>
    %204 = vector.shape_cast %203 : vector<1x8x512xf32> to vector<8x512xf32>
    %205 = arith.truncf %195 : vector<8x128xf32> to vector<8x128xbf16>
    %cst_61 = arith.constant dense<0.000000e+00> : vector<8x512xf32>
    %206 = tpu.matmul %205, %12, %cst_61 {dimension_numbers = #tpu.dot_dimension_numbers<[1], [0], [0], [1], [0, 0, 1, 1], [], []>} : vector<8x128xbf16>, vector<128x512xbf16>, vector<8x512xf32> -> vector<8x512xf32>
    %207 = arith.addf %204, %206 : vector<8x512xf32>
    %208 = vector.extract_strided_slice %207 {offsets = [0, 0], sizes = [8, 384], strides = [1, 1]} : vector<8x512xf32> to vector<8x384xf32>
    %209 = arith.negf %208 : vector<8x384xf32>
    %210 = math.exp %209 : vector<8x384xf32>
    %cst_62 = arith.constant 1.000000e+00 : f32
    %211 = vector.broadcast %cst_62 : f32 to vector<8x384xf32>
    %212 = arith.addf %211, %210 : vector<8x384xf32>
    %213 = arith.divf %211, %212 : vector<8x384xf32>
    %214 = vector.extract_strided_slice %213 {offsets = [0, 0], sizes = [8, 128], strides = [1, 1]} : vector<8x384xf32> to vector<8x128xf32>
    %215 = vector.extract_strided_slice %213 {offsets = [0, 128], sizes = [8, 128], strides = [1, 1]} : vector<8x384xf32> to vector<8x128xf32>
    %216 = vector.extract_strided_slice %213 {offsets = [0, 256], sizes = [8, 128], strides = [1, 1]} : vector<8x384xf32> to vector<8x128xf32>
    %217 = vector.extract_strided_slice %207 {offsets = [0, 384], sizes = [8, 128], strides = [1, 1]} : vector<8x512xf32> to vector<8x128xf32>
    %218 = math.tanh %217 : vector<8x128xf32>
    %219 = arith.mulf %215, %196 : vector<8x128xf32>
    %220 = arith.mulf %214, %218 : vector<8x128xf32>
    %221 = arith.addf %219, %220 : vector<8x128xf32>
    %222 = math.tanh %221 : vector<8x128xf32>
    %223 = arith.mulf %216, %222 : vector<8x128xf32>
    %224 = arith.addi %13, %c6_i32 : i32
    %c8_i32_63 = arith.constant 8 : i32
    %225 = arith.cmpi slt, %224, %c8_i32_63 : i32
    %226 = arith.select %225, %223, %195 : vector<8x128xf32>
    %227 = arith.select %225, %221, %196 : vector<8x128xf32>
    %228 = arith.truncf %226 : vector<8x128xf32> to vector<8x128xbf16>
    %229 = arith.index_cast %c6_i32 : i32 to index
    %c0_64 = arith.constant 0 : index
    %c0_65 = arith.constant 0 : index
    %230 = vector.load %arg6[%229, %c0_64, %c0_65] : memref<8x8x128xbf16, #tpu.memory_space<vmem>>, vector<1x8x128xbf16>
    %231 = vector.shape_cast %230 : vector<1x8x128xbf16> to vector<8x128xbf16>
    %232 = vector.shape_cast %228 : vector<8x128xbf16> to vector<1x8x128xbf16>
    tpu.vector_store %arg6[%229, %c0_64, %c0_65], %232 {strides = array<i32>} : memref<8x8x128xbf16, #tpu.memory_space<vmem>>, vector<1x8x128xbf16>,
    %c7_i32 = arith.constant 7 : i32
    %233 = arith.index_cast %c7_i32 : i32 to index
    %c0_66 = arith.constant 0 : index
    %c0_67 = arith.constant 0 : index
    %234 = vector.load %arg11[%233, %c0_66, %c0_67] : memref<8x8x512xf32, #tpu.memory_space<vmem>>, vector<1x8x512xf32>
    %235 = vector.shape_cast %234 : vector<1x8x512xf32> to vector<8x512xf32>
    %236 = arith.truncf %226 : vector<8x128xf32> to vector<8x128xbf16>
    %cst_68 = arith.constant dense<0.000000e+00> : vector<8x512xf32>
    %237 = tpu.matmul %236, %12, %cst_68 {dimension_numbers = #tpu.dot_dimension_numbers<[1], [0], [0], [1], [0, 0, 1, 1], [], []>} : vector<8x128xbf16>, vector<128x512xbf16>, vector<8x512xf32> -> vector<8x512xf32>
    %238 = arith.addf %235, %237 : vector<8x512xf32>
    %239 = vector.extract_strided_slice %238 {offsets = [0, 0], sizes = [8, 384], strides = [1, 1]} : vector<8x512xf32> to vector<8x384xf32>
    %240 = arith.negf %239 : vector<8x384xf32>
    %241 = math.exp %240 : vector<8x384xf32>
    %cst_69 = arith.constant 1.000000e+00 : f32
    %242 = vector.broadcast %cst_69 : f32 to vector<8x384xf32>
    %243 = arith.addf %242, %241 : vector<8x384xf32>
    %244 = arith.divf %242, %243 : vector<8x384xf32>
    %245 = vector.extract_strided_slice %244 {offsets = [0, 0], sizes = [8, 128], strides = [1, 1]} : vector<8x384xf32> to vector<8x128xf32>
    %246 = vector.extract_strided_slice %244 {offsets = [0, 128], sizes = [8, 128], strides = [1, 1]} : vector<8x384xf32> to vector<8x128xf32>
    %247 = vector.extract_strided_slice %244 {offsets = [0, 256], sizes = [8, 128], strides = [1, 1]} : vector<8x384xf32> to vector<8x128xf32>
    %248 = vector.extract_strided_slice %238 {offsets = [0, 384], sizes = [8, 128], strides = [1, 1]} : vector<8x512xf32> to vector<8x128xf32>
    %249 = math.tanh %248 : vector<8x128xf32>
    %250 = arith.mulf %246, %227 : vector<8x128xf32>
    %251 = arith.mulf %245, %249 : vector<8x128xf32>
    %252 = arith.addf %250, %251 : vector<8x128xf32>
    %253 = math.tanh %252 : vector<8x128xf32>
    %254 = arith.mulf %247, %253 : vector<8x128xf32>
    %255 = arith.addi %13, %c7_i32 : i32
    %c8_i32_70 = arith.constant 8 : i32
    %256 = arith.cmpi slt, %255, %c8_i32_70 : i32
    %257 = arith.select %256, %254, %226 : vector<8x128xf32>
    %258 = arith.select %256, %252, %227 : vector<8x128xf32>
    %259 = arith.truncf %257 : vector<8x128xf32> to vector<8x128xbf16>
    %260 = arith.index_cast %c7_i32 : i32 to index
    %c0_71 = arith.constant 0 : index
    %c0_72 = arith.constant 0 : index
    %261 = vector.load %arg6[%260, %c0_71, %c0_72] : memref<8x8x128xbf16, #tpu.memory_space<vmem>>, vector<1x8x128xbf16>
    %262 = vector.shape_cast %261 : vector<1x8x128xbf16> to vector<8x128xbf16>
    %263 = vector.shape_cast %259 : vector<8x128xbf16> to vector<1x8x128xbf16>
    tpu.vector_store %arg6[%260, %c0_71, %c0_72], %263 {strides = array<i32>} : memref<8x8x128xbf16, #tpu.memory_space<vmem>>, vector<1x8x128xbf16>,
    %c8_i32_73 = arith.constant 8 : i32
    %c0_74 = arith.constant 0 : index
    %c0_75 = arith.constant 0 : index
    %264 = vector.load %arg9[%c0_74, %c0_75] : memref<8x128xf32, #tpu.memory_space<vmem>>, vector<8x128xf32>
    tpu.vector_store %arg9[%c0_74, %c0_75], %257 {strides = array<i32>} : memref<8x128xf32, #tpu.memory_space<vmem>>, vector<8x128xf32>,
    %c0_76 = arith.constant 0 : index
    %c0_77 = arith.constant 0 : index
    %265 = vector.load %arg10[%c0_76, %c0_77] : memref<8x128xf32, #tpu.memory_space<vmem>>, vector<8x128xf32>
    tpu.vector_store %arg10[%c0_76, %c0_77], %258 {strides = array<i32>} : memref<8x128xf32, #tpu.memory_space<vmem>>, vector<8x128xf32>,
    %c0_i32_78 = arith.constant 0 : i32
    %266 = arith.cmpi eq, %arg1, %c0_i32_78 : i32
    %267 = arith.extui %266 : i1 to i32
    %c0_i32_79 = arith.constant 0 : i32
    %268 = arith.cmpi ne, %267, %c0_i32_79 : i32
    scf.if %268 {
      %c0_80 = arith.constant 0 : index
      %c0_81 = arith.constant 0 : index
      %269 = vector.load %arg7[%c0_80, %c0_81] : memref<8x128xf32, #tpu.memory_space<vmem>>, vector<8x128xf32>
      tpu.vector_store %arg7[%c0_80, %c0_81], %257 {strides = array<i32>} : memref<8x128xf32, #tpu.memory_space<vmem>>, vector<8x128xf32>,
      %c0_82 = arith.constant 0 : index
      %c0_83 = arith.constant 0 : index
      %270 = vector.load %arg8[%c0_82, %c0_83] : memref<8x128xf32, #tpu.memory_space<vmem>>, vector<8x128xf32>
      tpu.vector_store %arg8[%c0_82, %c0_83], %258 {strides = array<i32>} : memref<8x128xf32, #tpu.memory_space<vmem>>, vector<8x128xf32>,
    } else {
    }
    return
  }
  func.func @transform_0(%arg0: i32, %arg1: i32) -> (i32, i32, i32) {
    %c0_i32 = arith.constant 0 : i32
    %c0_i32_0 = arith.constant 0 : i32
    return %arg1, %arg0, %c0_i32 : i32, i32, i32
  }
  func.func @transform_1(%arg0: i32, %arg1: i32) -> (i32, i32) {
    %c0_i32 = arith.constant 0 : i32
    %c0_i32_0 = arith.constant 0 : i32
    %c0_i32_1 = arith.constant 0 : i32
    return %c0_i32, %c0_i32_0 : i32, i32
  }
  func.func @transform_2(%arg0: i32, %arg1: i32) -> (i32, i32) {
    %c0_i32 = arith.constant 0 : i32
    %c0_i32_0 = arith.constant 0 : i32
    %c0_i32_1 = arith.constant 0 : i32
    return %c0_i32, %c0_i32_0 : i32, i32
  }
  func.func @transform_3(%arg0: i32, %arg1: i32) -> (i32, i32) {
    %c0_i32 = arith.constant 0 : i32
    %c0_i32_0 = arith.constant 0 : i32
    %c0_i32_1 = arith.constant 0 : i32
    return %c0_i32, %c0_i32_0 : i32, i32
  }
  func.func @transform_4(%arg0: i32, %arg1: i32) -> (i32, i32, i32) {
    %c0_i32 = arith.constant 0 : i32
    %c0_i32_0 = arith.constant 0 : i32
    return %arg1, %arg0, %c0_i32 : i32, i32, i32
  }
  func.func @transform_5(%arg0: i32, %arg1: i32) -> (i32, i32) {
    %c0_i32 = arith.constant 0 : i32
    %c0_i32_0 = arith.constant 0 : i32
    return %arg0, %c0_i32 : i32, i32
  }
  func.func @transform_6(%arg0: i32, %arg1: i32) -> (i32, i32) {
    %c0_i32 = arith.constant 0 : i32
    %c0_i32_0 = arith.constant 0 : i32
    return %arg0, %c0_i32 : i32, i32
  }
}

</mosaic_0001>

<llo_original>
// kernel: tpu_custom_call.1
$region0: #{tpu_custom_call.1}
  #allocation0 [shape = 'u32[]', space=smem, size = 0x4, offset = 0x4, fixed_abs, tag = 'smem constant byte address 0x4 - core index']
  #allocation1 [shape = 'u32[72,128]{1,0:T(1,128)}', space=vmem, size = 0x9000, scoped, tag = 'internal scratch']
  #allocation2 [shape = 'f32[8,128]{1,0:T(8,128)}', space=vmem, size = 0x1000, scoped, tag = 'scratch operand']
  #allocation3 [shape = 'f32[8,128]{1,0:T(8,128)}', space=vmem, size = 0x1000, scoped, tag = 'scratch operand']
  #allocation4 [shape = 'f32[8,8,512]{2,1,0:T(8,128)}', space=vmem, size = 0x20000, scoped, tag = 'scratch operand']
  %s0 = inlined_call_operand.hbm [shape: bf16[8,8,128], index: 0, kind: input, shape index: {}]
  %s1 = inlined_call_operand.hbm [shape: bf16[128,512], index: 1, kind: input, shape index: {}]
  %s2 = inlined_call_operand.hbm [shape: bf16[128,512], index: 2, kind: input, shape index: {}]
  %s3 = inlined_call_operand.hbm [shape: f32[1,512], index: 3, kind: input, shape index: {}]
  %s4 = inlined_call_operand.hbm [shape: bf16[8,8,128], index: 4, kind: output, shape index: {0}]
  %s5 = inlined_call_operand.hbm [shape: f32[8,128], index: 5, kind: output, shape index: {1}]
  %s6 = inlined_call_operand.hbm [shape: f32[8,128], index: 6, kind: output, shape index: {2}]
  %7 = xla_tuple %s4, %s5, %s6
  %s8 = sld [smem:[#allocation0]]
  $region66: #{tpu_custom_call.1} parent=0
    _
  %s10 = ssub.s32 1, %s8
  %s11 = scalar_select 0, %s10, %s8
  $region1: #{tpu_custom_call.1} parent=0
    #allocation5 [shape = 'u8[16384]{0}', space=vmem, size = 0x4000, scoped, tag = 'input window, operand 0, single buffered']
    #allocation6 [shape = 's32[1]{0}', space=sflag, size = 0x4, scoped, tag = 'scoped memory for tpu_custom_call.1']
    #allocation7 [shape = 's32[1]{0}', space=sflag, size = 0x4, scoped, tag = 'scoped memory for tpu_custom_call.1']
    #allocation8 [shape = 'u8[131072]{0}', space=vmem, size = 0x20000, scoped, tag = 'input window, operand 1, single buffered']
    #allocation9 [shape = 's32[1]{0}', space=sflag, size = 0x4, scoped, tag = 'scoped memory for tpu_custom_call.1']
    #allocation10 [shape = 'u8[131072]{0}', space=vmem, size = 0x20000, scoped, tag = 'input window, operand 2, single buffered']
    #allocation11 [shape = 'u8[2048]{0}', space=vmem, size = 0x800, scoped, tag = 'input window, operand 3, single buffered']
    #allocation12 [shape = 's32[1]{0}', space=sflag, size = 0x4, scoped, tag = 'scoped memory for tpu_custom_call.1']
    #allocation13 [shape = 'u8[16384]{0}', space=vmem, size = 0x4000, scoped, tag = 'output window, operand 0, single buffered']
    #allocation14 [shape = 'u8[4096]{0}', space=vmem, size = 0x1000, scoped, tag = 'output window, operand 1, single buffered']
    #allocation15 [shape = 's32[1]{0}', space=sflag, size = 0x4, scoped, tag = 'scoped memory for tpu_custom_call.1']
    #allocation16 [shape = 'u8[4096]{0}', space=vmem, size = 0x1000, scoped, tag = 'output window, operand 2, single buffered']
    %12 = vsyncpa [#allocation6], 0
    %13 = vsyncpa [#allocation9], 0
    %14 = vsyncpa [#allocation12], 0
    %15 = vsyncpa [#allocation7], 0
    %16 = vsyncpa [#allocation15], 0
    // Predicated region
    $region2: #{tpu_custom_call.1} parent=1 // pred_check
      _
    $region3: #{tpu_custom_call.1} parent=1 // pred_check_branch
      %18 = sbr.rel (0) target = $region5
    $region4: #{tpu_custom_call.1} parent=1 // pred_region
      %20 = vsyncadd [#allocation6], 0
      %s21 = sshll.u32 %s0, 4
      %s22 = int_to_ptr.hbm [resolvable:$true] %s21
      %s23 = sshll.u32 [#allocation5], 4
      %s24 = int_to_ptr.vmem [resolvable:$true] %s23
      %29 = dma.hbm_to_vmem [thread:$0]  %s22, 512, %s24, [#allocation6], 64, 64, 4
    $region5: #{tpu_custom_call.1} parent=1 // pred_fallthru
      _
    // Predicated region
    $region6: #{tpu_custom_call.1} parent=1 // pred_check
      _
    $region7: #{tpu_custom_call.1} parent=1 // pred_check_branch
      %31 = sbr.rel (0) target = $region9
    $region8: #{tpu_custom_call.1} parent=1 // pred_region
      %33 = vsyncadd [#allocation9], 0
      %s34 = sshll.u32 %s1, 4
      %s35 = int_to_ptr.hbm [resolvable:$true] %s34
      %s36 = sshll.u32 [#allocation8], 4
      %s37 = int_to_ptr.vmem [resolvable:$true] %s36
      %42 = dma.hbm_to_vmem [thread:$0]  %s35, 4096, %s37, [#allocation9], 256, 256, 16
    $region9: #{tpu_custom_call.1} parent=1 // pred_fallthru
      _
    // Predicated region
    $region10: #{tpu_custom_call.1} parent=1 // pred_check
      _
    $region11: #{tpu_custom_call.1} parent=1 // pred_check_branch
      %44 = sbr.rel (0) target = $region13
    $region12: #{tpu_custom_call.1} parent=1 // pred_region
      %46 = vsyncadd [#allocation9], 0
      %s47 = sshll.u32 %s2, 4
      %s48 = int_to_ptr.hbm [resolvable:$true] %s47
      %s49 = sshll.u32 [#allocation10], 4
      %s50 = int_to_ptr.vmem [resolvable:$true] %s49
      %55 = dma.hbm_to_vmem [thread:$0]  %s48, 4096, %s50, [#allocation9], 256, 256, 16
    $region13: #{tpu_custom_call.1} parent=1 // pred_fallthru
      _
    // Predicated region
    $region14: #{tpu_custom_call.1} parent=1 // pred_check
      _
    $region15: #{tpu_custom_call.1} parent=1 // pred_check_branch
      %57 = sbr.rel (0) target = $region17
    $region16: #{tpu_custom_call.1} parent=1 // pred_region
      %59 = vsyncadd [#allocation12], 0
      %s61 = sshll.u32 %s3, 4
      %s62 = int_to_ptr.hbm [resolvable:$true] %s61
      %s63 = sshll.u32 [#allocation11], 4
      %s64 = int_to_ptr.vmem [resolvable:$true] %s63
      %66 = dma.hbm_to_vmem [thread:$0]  %s62, 64, %s64, [#allocation12]
    $region17: #{tpu_custom_call.1} parent=1 // pred_fallthru
      _
    // Predicated region
    $region18: #{tpu_custom_call.1} parent=1 // pred_check
      _
    $region19: #{tpu_custom_call.1} parent=1 // pred_check_branch
      %68 = sbr.rel (0) target = $region21
    $region20: #{tpu_custom_call.1} parent=1 // pred_region
      %70 = dma.done [#allocation6], 512
    $region21: #{tpu_custom_call.1} parent=1 // pred_fallthru
      _
    // Predicated region
    $region22: #{tpu_custom_call.1} parent=1 // pred_check
      _
    $region23: #{tpu_custom_call.1} parent=1 // pred_check_branch
      %72 = sbr.rel (0) target = $region25
    $region24: #{tpu_custom_call.1} parent=1 // pred_region
      %74 = dma.done [#allocation9], 4096
    $region25: #{tpu_custom_call.1} parent=1 // pred_fallthru
      _
    // Predicated region
    $region26: #{tpu_custom_call.1} parent=1 // pred_check
      _
    $region27: #{tpu_custom_call.1} parent=1 // pred_check_branch
      %76 = sbr.rel (0) target = $region29
    $region28: #{tpu_custom_call.1} parent=1 // pred_region
      %78 = dma.done [#allocation9], 4096
    $region29: #{tpu_custom_call.1} parent=1 // pred_fallthru
      _
    // Predicated region
    $region30: #{tpu_custom_call.1} parent=1 // pred_check
      _
    $region31: #{tpu_custom_call.1} parent=1 // pred_check_branch
      %80 = sbr.rel (0) target = $region33
    $region32: #{tpu_custom_call.1} parent=1 // pred_region
      %82 = dma.done [#allocation12], 64
    $region33: #{tpu_custom_call.1} parent=1 // pred_fallthru
      _
    %p83 = scmp.eq.s32.totalorder 0, 0
    // Predicated region
    $region34: #{tpu_custom_call.1} parent=1 // pred_check
      %p84 = pneg %p83
    $region35: #{tpu_custom_call.1} parent=1 // pred_check_branch
      %86 = sbr.rel (%p84) target = $region37
    $region36: #{tpu_custom_call.1} parent=1 // pred_region
      %87 = vst [vmem:[#allocation2] sm:$0xff] 0.0
      %88 = vst [vmem:[#allocation3] sm:$0xff] 0.0
    $region37: #{tpu_custom_call.1} parent=1 // pred_fallthru
      _
    %v89 = vld [vmem:[#allocation5] sm:$0xf]
    %v90 = vld [vmem:[#allocation5 + $0x4] sm:$0xf]
    %v91 = vld [vmem:[#allocation5 + $0x8] sm:$0xf]
    %v92 = vld [vmem:[#allocation5 + $0xc] sm:$0xf]
    %v93 = vld [vmem:[#allocation5 + $0x10] sm:$0xf]
    %v94 = vld [vmem:[#allocation5 + $0x14] sm:$0xf]
    %v95 = vld [vmem:[#allocation5 + $0x18] sm:$0xf]
    %v96 = vld [vmem:[#allocation5 + $0x1c] sm:$0xf]
    %v97 = vld [vmem:[#allocation8] sm:$0xff]
    %v98 = vld [vmem:[#allocation8 + $0x8] sm:$0xff]
    %v99 = vld [vmem:[#allocation8 + $0x10] sm:$0xff]
    %v100 = vld [vmem:[#allocation8 + $0x18] sm:$0xff]
    %v101 = vld [vmem:[#allocation8 + $0x20] sm:$0xff]
    %v102 = vld [vmem:[#allocation8 + $0x28] sm:$0xff]
    %v103 = vld [vmem:[#allocation8 + $0x30] sm:$0xff]
    %v104 = vld [vmem:[#allocation8 + $0x38] sm:$0xff]
    %v105 = vld [vmem:[#allocation8 + $0x40] sm:$0xff]
    %v106 = vld [vmem:[#allocation8 + $0x48] sm:$0xff]
    %v107 = vld [vmem:[#allocation8 + $0x50] sm:$0xff]
    %v108 = vld [vmem:[#allocation8 + $0x58] sm:$0xff]
    %v109 = vld [vmem:[#allocation8 + $0x60] sm:$0xff]
    %v110 = vld [vmem:[#allocation8 + $0x68] sm:$0xff]
    %v111 = vld [vmem:[#allocation8 + $0x70] sm:$0xff]
    %v112 = vld [vmem:[#allocation8 + $0x78] sm:$0xff]
    %v113 = vld [vmem:[#allocation8 + $0x80] sm:$0xff]
    %v114 = vld [vmem:[#allocation8 + $0x88] sm:$0xff]
    %v115 = vld [vmem:[#allocation8 + $0x90] sm:$0xff]
    %v116 = vld [vmem:[#allocation8 + $0x98] sm:$0xff]
    %v117 = vld [vmem:[#allocation8 + $0xa0] sm:$0xff]
    %v118 = vld [vmem:[#allocation8 + $0xa8] sm:$0xff]
    %v119 = vld [vmem:[#allocation8 + $0xb0] sm:$0xff]
    %v120 = vld [vmem:[#allocation8 + $0xb8] sm:$0xff]
    %v121 = vld [vmem:[#allocation8 + $0xc0] sm:$0xff]
    %v122 = vld [vmem:[#allocation8 + $0xc8] sm:$0xff]
    %v123 = vld [vmem:[#allocation8 + $0xd0] sm:$0xff]
    %v124 = vld [vmem:[#allocation8 + $0xd8] sm:$0xff]
    %v125 = vld [vmem:[#allocation8 + $0xe0] sm:$0xff]
    %v126 = vld [vmem:[#allocation8 + $0xe8] sm:$0xff]
    %v127 = vld [vmem:[#allocation8 + $0xf0] sm:$0xff]
    %v128 = vld [vmem:[#allocation8 + $0xf8] sm:$0xff]
    %v129 = vld [vmem:[#allocation11] sm:$0xf]
    %v131 = vperm.slane %v129, 0
    %v132 = vperm.slane %v129, 1
    %v133 = vperm.slane %v129, 2
    %v134 = vperm.slane %v129, 3
    %v147 = vunpack.c.l.b16 %v89
    %v148 = vunpack.c.l.b16 %v90
    %v149 = vunpack.c.l.b16 %v91
    %v150 = vunpack.c.l.b16 %v92
    %v151 = vunpack.c.l.b16 %v93
    %v152 = vunpack.c.l.b16 %v94
    %v153 = vunpack.c.l.b16 %v95
    %v154 = vunpack.c.l.b16 %v96
    %v155 = vpack.c.b16 %v148, %v147
    %v156 = vpack.c.b16 %v150, %v149
    %v157 = vpack.c.b16 %v152, %v151
    %v158 = vpack.c.b16 %v154, %v153
    %v195 = vunpack.c.l.b16 %v97
    %v196 = vunpack.c.h.b16 %v97
    %v197 = vunpack.c.l.b16 %v98
    %v198 = vunpack.c.h.b16 %v98
    %v199 = vunpack.c.l.b16 %v99
    %v200 = vunpack.c.h.b16 %v99
    %v201 = vunpack.c.l.b16 %v100
    %v202 = vunpack.c.h.b16 %v100
    %v203 = vunpack.c.l.b16 %v101
    %v204 = vunpack.c.h.b16 %v101
    %v205 = vunpack.c.l.b16 %v102
    %v206 = vunpack.c.h.b16 %v102
    %v207 = vunpack.c.l.b16 %v103
    %v208 = vunpack.c.h.b16 %v103
    %v209 = vunpack.c.l.b16 %v104
    %v210 = vunpack.c.h.b16 %v104
    %v211 = vunpack.c.l.b16 %v105
    %v212 = vunpack.c.h.b16 %v105
    %v213 = vunpack.c.l.b16 %v106
    %v214 = vunpack.c.h.b16 %v106
    %v215 = vunpack.c.l.b16 %v107
    %v216 = vunpack.c.h.b16 %v107
    %v217 = vunpack.c.l.b16 %v108
    %v218 = vunpack.c.h.b16 %v108
    %v219 = vunpack.c.l.b16 %v109
    %v220 = vunpack.c.h.b16 %v109
    %v221 = vunpack.c.l.b16 %v110
    %v222 = vunpack.c.h.b16 %v110
    %v223 = vunpack.c.l.b16 %v111
    %v224 = vunpack.c.h.b16 %v111
    %v225 = vunpack.c.l.b16 %v112
    %v226 = vunpack.c.h.b16 %v112
    %v227 = vunpack.c.l.b16 %v113
    %v228 = vunpack.c.h.b16 %v113
    %v229 = vunpack.c.l.b16 %v114
    %v230 = vunpack.c.h.b16 %v114
    %v231 = vunpack.c.l.b16 %v115
    %v232 = vunpack.c.h.b16 %v115
    %v233 = vunpack.c.l.b16 %v116
    %v234 = vunpack.c.h.b16 %v116
    %v235 = vunpack.c.l.b16 %v117
    %v236 = vunpack.c.h.b16 %v117
    %v237 = vunpack.c.l.b16 %v118
    %v238 = vunpack.c.h.b16 %v118
    %v239 = vunpack.c.l.b16 %v119
    %v240 = vunpack.c.h.b16 %v119
    %v241 = vunpack.c.l.b16 %v120
    %v242 = vunpack.c.h.b16 %v120
    %v243 = vunpack.c.l.b16 %v121
    %v244 = vunpack.c.h.b16 %v121
    %v245 = vunpack.c.l.b16 %v122
    %v246 = vunpack.c.h.b16 %v122
    %v247 = vunpack.c.l.b16 %v123
    %v248 = vunpack.c.h.b16 %v123
    %v249 = vunpack.c.l.b16 %v124
    %v250 = vunpack.c.h.b16 %v124
    %v251 = vunpack.c.l.b16 %v125
    %v252 = vunpack.c.h.b16 %v125
    %v253 = vunpack.c.l.b16 %v126
    %v254 = vunpack.c.h.b16 %v126
    %v255 = vunpack.c.l.b16 %v127
    %v256 = vunpack.c.h.b16 %v127
    %v257 = vunpack.c.l.b16 %v128
    %v258 = vunpack.c.h.b16 %v128
    %v259 = vpack.c.b16 %v199, %v195
    %v260 = vpack.c.b16 %v200, %v196
    %v261 = vpack.c.b16 %v201, %v197
    %v262 = vpack.c.b16 %v202, %v198
    %v263 = vpack.c.b16 %v207, %v203
    %v264 = vpack.c.b16 %v208, %v204
    %v265 = vpack.c.b16 %v209, %v205
    %v266 = vpack.c.b16 %v210, %v206
    %v267 = vpack.c.b16 %v215, %v211
    %v268 = vpack.c.b16 %v216, %v212
    %v269 = vpack.c.b16 %v217, %v213
    %v270 = vpack.c.b16 %v218, %v214
    %v271 = vpack.c.b16 %v223, %v219
    %v272 = vpack.c.b16 %v224, %v220
    %v273 = vpack.c.b16 %v225, %v221
    %v274 = vpack.c.b16 %v226, %v222
    %v275 = vpack.c.b16 %v231, %v227
    %v276 = vpack.c.b16 %v232, %v228
    %v277 = vpack.c.b16 %v233, %v229
    %v278 = vpack.c.b16 %v234, %v230
    %v279 = vpack.c.b16 %v239, %v235
    %v280 = vpack.c.b16 %v240, %v236
    %v281 = vpack.c.b16 %v241, %v237
    %v282 = vpack.c.b16 %v242, %v238
    %v283 = vpack.c.b16 %v247, %v243
    %v284 = vpack.c.b16 %v248, %v244
    %v285 = vpack.c.b16 %v249, %v245
    %v286 = vpack.c.b16 %v250, %v246
    %v287 = vpack.c.b16 %v255, %v251
    %v288 = vpack.c.b16 %v256, %v252
    %v289 = vpack.c.b16 %v257, %v253
    %v290 = vpack.c.b16 %v258, %v254
    %323 = vmatpush.bf16.msra.mxu0 %v287
    %324 = vmatpush.bf16.msra.mxu0 %v283
    %325 = vmatpush.bf16.msra.mxu0 %v279
    %326 = vmatpush.bf16.msra.mxu0 %v275
    %327 = vmatpush.bf16.msra.mxu0 %v271
    %328 = vmatpush.bf16.msra.mxu0 %v267
    %329 = vmatpush.bf16.msra.mxu0 %v263
    %330 = vmatpush.bf16.msra.mxu0 %v259
    %331 = vmatmul.bf16.gmra.mxu0 %v155
    %v332 = vpop.f32.mrf.mxu0
    %v333 = vadd.f32 %v131, %v332
    %v334 = vpop.f32.mrf.mxu0
    %v335 = vadd.f32 %v131, %v334
    %336 = vmatmul.bf16.gmra.mxu0 %v156
    %v337 = vpop.f32.mrf.mxu0
    %v338 = vadd.f32 %v131, %v337
    %v339 = vpop.f32.mrf.mxu0
    %v340 = vadd.f32 %v131, %v339
    %341 = vmatmul.bf16.gmra.mxu0 %v157
    %v342 = vpop.f32.mrf.mxu0
    %v343 = vadd.f32 %v131, %v342
    %v344 = vpop.f32.mrf.mxu0
    %v345 = vadd.f32 %v131, %v344
    %346 = vmatmul.bf16.gmra.mxu0 %v158
    %v347 = vpop.f32.mrf.mxu0
    %v348 = vadd.f32 %v131, %v347
    %v349 = vpop.f32.mrf.mxu0
    %v350 = vadd.f32 %v131, %v349
    %351 = vdwg.mxu0
    %352 = vmatpush.bf16.msra.mxu0 %v288
    %353 = vmatpush.bf16.msra.mxu0 %v284
    %354 = vmatpush.bf16.msra.mxu0 %v280
    %355 = vmatpush.bf16.msra.mxu0 %v276
    %356 = vmatpush.bf16.msra.mxu0 %v272
    %357 = vmatpush.bf16.msra.mxu0 %v268
    %358 = vmatpush.bf16.msra.mxu0 %v264
    %359 = vmatpush.bf16.msra.mxu0 %v260
    %360 = vmatmul.bf16.gmra.mxu0 %v155
    %v361 = vpop.f32.mrf.mxu0
    %v362 = vadd.f32 %v132, %v361
    %v363 = vpop.f32.mrf.mxu0
    %v364 = vadd.f32 %v132, %v363
    %365 = vmatmul.bf16.gmra.mxu0 %v156
    %v366 = vpop.f32.mrf.mxu0
    %v367 = vadd.f32 %v132, %v366
    %v368 = vpop.f32.mrf.mxu0
    %v369 = vadd.f32 %v132, %v368
    %370 = vmatmul.bf16.gmra.mxu0 %v157
    %v371 = vpop.f32.mrf.mxu0
    %v372 = vadd.f32 %v132, %v371
    %v373 = vpop.f32.mrf.mxu0
    %v374 = vadd.f32 %v132, %v373
    %375 = vmatmul.bf16.gmra.mxu0 %v158
    %v376 = vpop.f32.mrf.mxu0
    %v377 = vadd.f32 %v132, %v376
    %v378 = vpop.f32.mrf.mxu0
    %v379 = vadd.f32 %v132, %v378
    %380 = vdwg.mxu0
    %381 = vmatpush.bf16.msra.mxu0 %v289
    %382 = vmatpush.bf16.msra.mxu0 %v285
    %383 = vmatpush.bf16.msra.mxu0 %v281
    %384 = vmatpush.bf16.msra.mxu0 %v277
    %385 = vmatpush.bf16.msra.mxu0 %v273
    %386 = vmatpush.bf16.msra.mxu0 %v269
    %387 = vmatpush.bf16.msra.mxu0 %v265
    %388 = vmatpush.bf16.msra.mxu0 %v261
    %389 = vmatmul.bf16.gmra.mxu0 %v155
    %v390 = vpop.f32.mrf.mxu0
    %v391 = vadd.f32 %v133, %v390
    %v392 = vpop.f32.mrf.mxu0
    %v393 = vadd.f32 %v133, %v392
    %394 = vmatmul.bf16.gmra.mxu0 %v156
    %v395 = vpop.f32.mrf.mxu0
    %v396 = vadd.f32 %v133, %v395
    %v397 = vpop.f32.mrf.mxu0
    %v398 = vadd.f32 %v133, %v397
    %399 = vmatmul.bf16.gmra.mxu0 %v157
    %v400 = vpop.f32.mrf.mxu0
    %v401 = vadd.f32 %v133, %v400
    %v402 = vpop.f32.mrf.mxu0
    %v403 = vadd.f32 %v133, %v402
    %404 = vmatmul.bf16.gmra.mxu0 %v158
    %v405 = vpop.f32.mrf.mxu0
    %v406 = vadd.f32 %v133, %v405
    %v407 = vpop.f32.mrf.mxu0
    %v408 = vadd.f32 %v133, %v407
    %409 = vdwg.mxu0
    %410 = vmatpush.bf16.msra.mxu0 %v290
    %411 = vmatpush.bf16.msra.mxu0 %v286
    %412 = vmatpush.bf16.msra.mxu0 %v282
    %413 = vmatpush.bf16.msra.mxu0 %v278
    %414 = vmatpush.bf16.msra.mxu0 %v274
    %415 = vmatpush.bf16.msra.mxu0 %v270
    %416 = vmatpush.bf16.msra.mxu0 %v266
    %417 = vmatpush.bf16.msra.mxu0 %v262
    %418 = vmatmul.bf16.gmra.mxu0 %v155
    %v419 = vpop.f32.mrf.mxu0
    %v420 = vadd.f32 %v134, %v419
    %v421 = vpop.f32.mrf.mxu0
    %v422 = vadd.f32 %v134, %v421
    %423 = vmatmul.bf16.gmra.mxu0 %v156
    %v424 = vpop.f32.mrf.mxu0
    %v425 = vadd.f32 %v134, %v424
    %v426 = vpop.f32.mrf.mxu0
    %v427 = vadd.f32 %v134, %v426
    %428 = vmatmul.bf16.gmra.mxu0 %v157
    %v429 = vpop.f32.mrf.mxu0
    %v430 = vadd.f32 %v134, %v429
    %v431 = vpop.f32.mrf.mxu0
    %v432 = vadd.f32 %v134, %v431
    %433 = vmatmul.bf16.gmra.mxu0 %v158
    %v434 = vpop.f32.mrf.mxu0
    %v435 = vadd.f32 %v134, %v434
    %v436 = vpop.f32.mrf.mxu0
    %v437 = vadd.f32 %v134, %v436
    %438 = vdwg.mxu0
    %439 = vst [vmem:[#allocation4] sm:$0xff] %v333
    %440 = vst [vmem:[#allocation4 + $0x8] sm:$0xff] %v362
    %441 = vst [vmem:[#allocation4 + $0x10] sm:$0xff] %v391
    %442 = vst [vmem:[#allocation4 + $0x18] sm:$0xff] %v420
    %443 = vst [vmem:[#allocation4 + $0x20] sm:$0xff] %v335
    %444 = vst [vmem:[#allocation4 + $0x28] sm:$0xff] %v364
    %445 = vst [vmem:[#allocation4 + $0x30] sm:$0xff] %v393
    %446 = vst [vmem:[#allocation4 + $0x38] sm:$0xff] %v422
    %447 = vst [vmem:[#allocation4 + $0x40] sm:$0xff] %v338
    %448 = vst [vmem:[#allocation4 + $0x48] sm:$0xff] %v367
    %449 = vst [vmem:[#allocation4 + $0x50] sm:$0xff] %v396
    %450 = vst [vmem:[#allocation4 + $0x58] sm:$0xff] %v425
    %451 = vst [vmem:[#allocation4 + $0x60] sm:$0xff] %v340
    %452 = vst [vmem:[#allocation4 + $0x68] sm:$0xff] %v369
    %453 = vst [vmem:[#allocation4 + $0x70] sm:$0xff] %v398
    %454 = vst [vmem:[#allocation4 + $0x78] sm:$0xff] %v427
    %455 = vst [vmem:[#allocation4 + $0x80] sm:$0xff] %v343
    %456 = vst [vmem:[#allocation4 + $0x88] sm:$0xff] %v372
    %457 = vst [vmem:[#allocation4 + $0x90] sm:$0xff] %v401
    %458 = vst [vmem:[#allocation4 + $0x98] sm:$0xff] %v430
    %459 = vst [vmem:[#allocation4 + $0xa0] sm:$0xff] %v345
    %460 = vst [vmem:[#allocation4 + $0xa8] sm:$0xff] %v374
    %461 = vst [vmem:[#allocation4 + $0xb0] sm:$0xff] %v403
    %462 = vst [vmem:[#allocation4 + $0xb8] sm:$0xff] %v432
    %463 = vst [vmem:[#allocation4 + $0xc0] sm:$0xff] %v348
    %464 = vst [vmem:[#allocation4 + $0xc8] sm:$0xff] %v377
    %465 = vst [vmem:[#allocation4 + $0xd0] sm:$0xff] %v406
    %466 = vst [vmem:[#allocation4 + $0xd8] sm:$0xff] %v435
    %467 = vst [vmem:[#allocation4 + $0xe0] sm:$0xff] %v350
    %468 = vst [vmem:[#allocation4 + $0xe8] sm:$0xff] %v379
    %469 = vst [vmem:[#allocation4 + $0xf0] sm:$0xff] %v408
    %470 = vst [vmem:[#allocation4 + $0xf8] sm:$0xff] %v437
    %v471 = vld [vmem:[#allocation10] sm:$0xff]
    %v472 = vld [vmem:[#allocation10 + $0x8] sm:$0xff]
    %v473 = vld [vmem:[#allocation10 + $0x10] sm:$0xff]
    %v474 = vld [vmem:[#allocation10 + $0x18] sm:$0xff]
    %v475 = vld [vmem:[#allocation10 + $0x20] sm:$0xff]
    %v476 = vld [vmem:[#allocation10 + $0x28] sm:$0xff]
    %v477 = vld [vmem:[#allocation10 + $0x30] sm:$0xff]
    %v478 = vld [vmem:[#allocation10 + $0x38] sm:$0xff]
    %v479 = vld [vmem:[#allocation10 + $0x40] sm:$0xff]
    %v480 = vld [vmem:[#allocation10 + $0x48] sm:$0xff]
    %v481 = vld [vmem:[#allocation10 + $0x50] sm:$0xff]
    %v482 = vld [vmem:[#allocation10 + $0x58] sm:$0xff]
    %v483 = vld [vmem:[#allocation10 + $0x60] sm:$0xff]
    %v484 = vld [vmem:[#allocation10 + $0x68] sm:$0xff]
    %v485 = vld [vmem:[#allocation10 + $0x70] sm:$0xff]
    %v486 = vld [vmem:[#allocation10 + $0x78] sm:$0xff]
    %v487 = vld [vmem:[#allocation10 + $0x80] sm:$0xff]
    %v488 = vld [vmem:[#allocation10 + $0x88] sm:$0xff]
    %v489 = vld [vmem:[#allocation10 + $0x90] sm:$0xff]
    %v490 = vld [vmem:[#allocation10 + $0x98] sm:$0xff]
    %v491 = vld [vmem:[#allocation10 + $0xa0] sm:$0xff]
    %v492 = vld [vmem:[#allocation10 + $0xa8] sm:$0xff]
    %v493 = vld [vmem:[#allocation10 + $0xb0] sm:$0xff]
    %v494 = vld [vmem:[#allocation10 + $0xb8] sm:$0xff]
    %v495 = vld [vmem:[#allocation10 + $0xc0] sm:$0xff]
    %v496 = vld [vmem:[#allocation10 + $0xc8] sm:$0xff]
    %v497 = vld [vmem:[#allocation10 + $0xd0] sm:$0xff]
    %v498 = vld [vmem:[#allocation10 + $0xd8] sm:$0xff]
    %v499 = vld [vmem:[#allocation10 + $0xe0] sm:$0xff]
    %v500 = vld [vmem:[#allocation10 + $0xe8] sm:$0xff]
    %v501 = vld [vmem:[#allocation10 + $0xf0] sm:$0xff]
    %v502 = vld [vmem:[#allocation10 + $0xf8] sm:$0xff]
    %s503 = smul.u32 0, 8
    %v504 = vld [vmem:[#allocation2] sm:$0xff]
    %v505 = vld [vmem:[#allocation3] sm:$0xff]
    %v506 = vld [vmem:[#allocation4] sm:$0xff]
    %v507 = vld [vmem:[#allocation4 + $0x8] sm:$0xff]
    %v508 = vld [vmem:[#allocation4 + $0x10] sm:$0xff]
    %v509 = vld [vmem:[#allocation4 + $0x18] sm:$0xff]
    %v510 = vpack.c.bf16 %v504, %v504
    %v543 = vunpack.c.l.b16 %v471
    %v544 = vunpack.c.h.b16 %v471
    %v545 = vunpack.c.l.b16 %v472
    %v546 = vunpack.c.h.b16 %v472
    %v547 = vunpack.c.l.b16 %v473
    %v548 = vunpack.c.h.b16 %v473
    %v549 = vunpack.c.l.b16 %v474
    %v550 = vunpack.c.h.b16 %v474
    %v551 = vunpack.c.l.b16 %v475
    %v552 = vunpack.c.h.b16 %v475
    %v553 = vunpack.c.l.b16 %v476
    %v554 = vunpack.c.h.b16 %v476
    %v555 = vunpack.c.l.b16 %v477
    %v556 = vunpack.c.h.b16 %v477
    %v557 = vunpack.c.l.b16 %v478
    %v558 = vunpack.c.h.b16 %v478
    %v559 = vunpack.c.l.b16 %v479
    %v560 = vunpack.c.h.b16 %v479
    %v561 = vunpack.c.l.b16 %v480
    %v562 = vunpack.c.h.b16 %v480
    %v563 = vunpack.c.l.b16 %v481
    %v564 = vunpack.c.h.b16 %v481
    %v565 = vunpack.c.l.b16 %v482
    %v566 = vunpack.c.h.b16 %v482
    %v567 = vunpack.c.l.b16 %v483
    %v568 = vunpack.c.h.b16 %v483
    %v569 = vunpack.c.l.b16 %v484
    %v570 = vunpack.c.h.b16 %v484
    %v571 = vunpack.c.l.b16 %v485
    %v572 = vunpack.c.h.b16 %v485
    %v573 = vunpack.c.l.b16 %v486
    %v574 = vunpack.c.h.b16 %v486
    %v575 = vunpack.c.l.b16 %v487
    %v576 = vunpack.c.h.b16 %v487
    %v577 = vunpack.c.l.b16 %v488
    %v578 = vunpack.c.h.b16 %v488
    %v579 = vunpack.c.l.b16 %v489
    %v580 = vunpack.c.h.b16 %v489
    %v581 = vunpack.c.l.b16 %v490
    %v582 = vunpack.c.h.b16 %v490
    %v583 = vunpack.c.l.b16 %v491
    %v584 = vunpack.c.h.b16 %v491
    %v585 = vunpack.c.l.b16 %v492
    %v586 = vunpack.c.h.b16 %v492
    %v587 = vunpack.c.l.b16 %v493
    %v588 = vunpack.c.h.b16 %v493
    %v589 = vunpack.c.l.b16 %v494
    %v590 = vunpack.c.h.b16 %v494
    %v591 = vunpack.c.l.b16 %v495
    %v592 = vunpack.c.h.b16 %v495
    %v593 = vunpack.c.l.b16 %v496
    %v594 = vunpack.c.h.b16 %v496
    %v595 = vunpack.c.l.b16 %v497
    %v596 = vunpack.c.h.b16 %v497
    %v597 = vunpack.c.l.b16 %v498
    %v598 = vunpack.c.h.b16 %v498
    %v599 = vunpack.c.l.b16 %v499
    %v600 = vunpack.c.h.b16 %v499
    %v601 = vunpack.c.l.b16 %v500
    %v602 = vunpack.c.h.b16 %v500
    %v603 = vunpack.c.l.b16 %v501
    %v604 = vunpack.c.h.b16 %v501
    %v605 = vunpack.c.l.b16 %v502
    %v606 = vunpack.c.h.b16 %v502
    %v607 = vpack.c.b16 %v547, %v543
    %v608 = vpack.c.b16 %v548, %v544
    %v609 = vpack.c.b16 %v549, %v545
    %v610 = vpack.c.b16 %v550, %v546
    %v611 = vpack.c.b16 %v555, %v551
    %v612 = vpack.c.b16 %v556, %v552
    %v613 = vpack.c.b16 %v557, %v553
    %v614 = vpack.c.b16 %v558, %v554
    %v615 = vpack.c.b16 %v563, %v559
    %v616 = vpack.c.b16 %v564, %v560
    %v617 = vpack.c.b16 %v565, %v561
    %v618 = vpack.c.b16 %v566, %v562
    %v619 = vpack.c.b16 %v571, %v567
    %v620 = vpack.c.b16 %v572, %v568
    %v621 = vpack.c.b16 %v573, %v569
    %v622 = vpack.c.b16 %v574, %v570
    %v623 = vpack.c.b16 %v579, %v575
    %v624 = vpack.c.b16 %v580, %v576
    %v625 = vpack.c.b16 %v581, %v577
    %v626 = vpack.c.b16 %v582, %v578
    %v627 = vpack.c.b16 %v587, %v583
    %v628 = vpack.c.b16 %v588, %v584
    %v629 = vpack.c.b16 %v589, %v585
    %v630 = vpack.c.b16 %v590, %v586
    %v631 = vpack.c.b16 %v595, %v591
    %v632 = vpack.c.b16 %v596, %v592
    %v633 = vpack.c.b16 %v597, %v593
    %v634 = vpack.c.b16 %v598, %v594
    %v635 = vpack.c.b16 %v603, %v599
    %v636 = vpack.c.b16 %v604, %v600
    %v637 = vpack.c.b16 %v605, %v601
    %v638 = vpack.c.b16 %v606, %v602
    %671 = vmatpush.bf16.msra.mxu0 %v635
    %672 = vmatpush.bf16.msra.mxu0 %v631
    %673 = vmatpush.bf16.msra.mxu0 %v627
    %674 = vmatpush.bf16.msra.mxu0 %v623
    %675 = vmatpush.bf16.msra.mxu0 %v619
    %676 = vmatpush.bf16.msra.mxu0 %v615
    %677 = vmatpush.bf16.msra.mxu0 %v611
    %678 = vmatpush.bf16.msra.mxu0 %v607
    %679 = vmatmul.bf16.gmra.mxu0 %v510
    %v680 = vpop.f32.mrf.mxu0
    %v681 = vadd.f32 0.0, %v680
    %v682 = vpop.f32.mrf.mxu0
    %683 = vdwg.mxu0
    %684 = vmatpush.bf16.msra.mxu0 %v636
    %685 = vmatpush.bf16.msra.mxu0 %v632
    %686 = vmatpush.bf16.msra.mxu0 %v628
    %687 = vmatpush.bf16.msra.mxu0 %v624
    %688 = vmatpush.bf16.msra.mxu0 %v620
    %689 = vmatpush.bf16.msra.mxu0 %v616
    %690 = vmatpush.bf16.msra.mxu0 %v612
    %691 = vmatpush.bf16.msra.mxu0 %v608
    %692 = vmatmul.bf16.gmra.mxu0 %v510
    %v693 = vpop.f32.mrf.mxu0
    %v694 = vadd.f32 0.0, %v693
    %v695 = vpop.f32.mrf.mxu0
    %696 = vdwg.mxu0
    %697 = vmatpush.bf16.msra.mxu0 %v637
    %698 = vmatpush.bf16.msra.mxu0 %v633
    %699 = vmatpush.bf16.msra.mxu0 %v629
    %700 = vmatpush.bf16.msra.mxu0 %v625
    %701 = vmatpush.bf16.msra.mxu0 %v621
    %702 = vmatpush.bf16.msra.mxu0 %v617
    %703 = vmatpush.bf16.msra.mxu0 %v613
    %704 = vmatpush.bf16.msra.mxu0 %v609
    %705 = vmatmul.bf16.gmra.mxu0 %v510
    %v706 = vpop.f32.mrf.mxu0
    %v707 = vadd.f32 0.0, %v706
    %v708 = vpop.f32.mrf.mxu0
    %709 = vdwg.mxu0
    %710 = vmatpush.bf16.msra.mxu0 %v638
    %711 = vmatpush.bf16.msra.mxu0 %v634
    %712 = vmatpush.bf16.msra.mxu0 %v630
    %713 = vmatpush.bf16.msra.mxu0 %v626
    %714 = vmatpush.bf16.msra.mxu0 %v622
    %715 = vmatpush.bf16.msra.mxu0 %v618
    %716 = vmatpush.bf16.msra.mxu0 %v614
    %717 = vmatpush.bf16.msra.mxu0 %v610
    %718 = vmatmul.bf16.gmra.mxu0 %v510
    %v719 = vpop.f32.mrf.mxu0
    %v720 = vadd.f32 0.0, %v719
    %v721 = vpop.f32.mrf.mxu0
    %722 = vdwg.mxu0
    %v723 = vadd.f32 %v506, %v681
    %v724 = vadd.f32 %v507, %v694
    %v725 = vadd.f32 %v508, %v707
    %v726 = vadd.f32 %v509, %v720
    %v727 = vxor.u32 %v723, 2147483648
    %v728 = vxor.u32 %v724, 2147483648
    %v729 = vxor.u32 %v725, 2147483648
    %v730 = vmul.f32 %v727, 1.442695
    %v731 = vpow.pop %v730
    %v732 = vmul.f32 %v728, 1.442695
    %v733 = vpow.pop %v732
    %v734 = vmul.f32 %v729, 1.442695
    %v735 = vpow.pop %v734
    %v736 = vadd.f32 %v731, 1.0
    %v737 = vadd.f32 %v733, 1.0
    %v738 = vadd.f32 %v735, 1.0
    %v739 = vrcp.pop %v736
    %v740 = vmul.f32 %v736, %v739
    %v741 = vsub.f32 1.0, %v740
    %v742 = vmul.f32 %v739, %v741
    %v743 = vadd.f32 %v739, %v742
    %vm744 = vweird.f32 %v736
    %vm745 = vweird.f32 %v739
    %vm746 = vmor %vm744, %vm745
    %v747 = vsel %vm746, %v739, %v743
    %v748 = vand.u32 2147483647, %v736
    %vm749 = vcmp.eq.f32.partialorder %v748, 8.507059e+37
    %v750 = vand.u32 %v736, 2147483648
    %v751 = vor.u32 1.1754944e-38, %v750
    %v752 = vsel %vm749, %v751, %v747
    %v753 = vmul.f32 1.0, %v752
    %v754 = vrcp.pop %v737
    %v755 = vmul.f32 %v737, %v754
    %v756 = vsub.f32 1.0, %v755
    %v757 = vmul.f32 %v754, %v756
    %v758 = vadd.f32 %v754, %v757
    %vm759 = vweird.f32 %v737
    %vm760 = vweird.f32 %v754
    %vm761 = vmor %vm759, %vm760
    %v762 = vsel %vm761, %v754, %v758
    %v763 = vand.u32 2147483647, %v737
    %vm764 = vcmp.eq.f32.partialorder %v763, 8.507059e+37
    %v765 = vand.u32 %v737, 2147483648
    %v766 = vor.u32 1.1754944e-38, %v765
    %v767 = vsel %vm764, %v766, %v762
    %v768 = vmul.f32 1.0, %v767
    %v769 = vrcp.pop %v738
    %v770 = vmul.f32 %v738, %v769
    %v771 = vsub.f32 1.0, %v770
    %v772 = vmul.f32 %v769, %v771
    %v773 = vadd.f32 %v769, %v772
    %vm774 = vweird.f32 %v738
    %vm775 = vweird.f32 %v769
    %vm776 = vmor %vm774, %vm775
    %v777 = vsel %vm776, %v769, %v773
    %v778 = vand.u32 2147483647, %v738
    %vm779 = vcmp.eq.f32.partialorder %v778, 8.507059e+37
    %v780 = vand.u32 %v738, 2147483648
    %v781 = vor.u32 1.1754944e-38, %v780
    %v782 = vsel %vm779, %v781, %v777
    %v783 = vmul.f32 1.0, %v782
    %v784 = vtanh.pop %v726
    %v785 = vmul.f32 %v768, %v505
    %v786 = vmul.f32 %v753, %v784
    %v787 = vadd.f32 %v785, %v786
    %v788 = vtanh.pop %v787
    %v789 = vmul.f32 %v783, %v788
    %p790 = scmp.lt.s32.totalorder %s503, 8
    %s791 = scalar_select %p790, 1, 0
    %v792 = vstv %s791
    %vm793 = vcmp.eq.s32.totalorder %v792, 1
    %v794 = vsel %vm793, %v789, %v504
    %v795 = vsel %vm793, %v787, %v505
    %v796 = vpack.c.bf16 %v794, %v794
    %797 = vst [vmem:[#allocation13] sm:$0xf] %v796
    %s798 = scalar_lea.vmem [#allocation4], 32
    %v799 = vld [vmem:[%s798] sm:$0xff]
    %v800 = vld [vmem:[%s798 + $0x8] sm:$0xff]
    %v801 = vld [vmem:[%s798 + $0x10] sm:$0xff]
    %v802 = vld [vmem:[%s798 + $0x18] sm:$0xff]
    %803 = vmatpush.bf16.msra.mxu0 %v635
    %804 = vmatpush.bf16.msra.mxu0 %v631
    %805 = vmatpush.bf16.msra.mxu0 %v627
    %806 = vmatpush.bf16.msra.mxu0 %v623
    %807 = vmatpush.bf16.msra.mxu0 %v619
    %808 = vmatpush.bf16.msra.mxu0 %v615
    %809 = vmatpush.bf16.msra.mxu0 %v611
    %810 = vmatpush.bf16.msra.mxu0 %v607
    %811 = vmatmul.bf16.gmra.mxu0 %v796
    %v812 = vpop.f32.mrf.mxu0
    %v813 = vadd.f32 0.0, %v812
    %v814 = vpop.f32.mrf.mxu0
    %815 = vdwg.mxu0
    %816 = vmatpush.bf16.msra.mxu0 %v636
    %817 = vmatpush.bf16.msra.mxu0 %v632
    %818 = vmatpush.bf16.msra.mxu0 %v628
    %819 = vmatpush.bf16.msra.mxu0 %v624
    %820 = vmatpush.bf16.msra.mxu0 %v620
    %821 = vmatpush.bf16.msra.mxu0 %v616
    %822 = vmatpush.bf16.msra.mxu0 %v612
    %823 = vmatpush.bf16.msra.mxu0 %v608
    %824 = vmatmul.bf16.gmra.mxu0 %v796
    %v825 = vpop.f32.mrf.mxu0
    %v826 = vadd.f32 0.0, %v825
    %v827 = vpop.f32.mrf.mxu0
    %828 = vdwg.mxu0
    %829 = vmatpush.bf16.msra.mxu0 %v637
    %830 = vmatpush.bf16.msra.mxu0 %v633
    %831 = vmatpush.bf16.msra.mxu0 %v629
    %832 = vmatpush.bf16.msra.mxu0 %v625
    %833 = vmatpush.bf16.msra.mxu0 %v621
    %834 = vmatpush.bf16.msra.mxu0 %v617
    %835 = vmatpush.bf16.msra.mxu0 %v613
    %836 = vmatpush.bf16.msra.mxu0 %v609
    %837 = vmatmul.bf16.gmra.mxu0 %v796
    %v838 = vpop.f32.mrf.mxu0
    %v839 = vadd.f32 0.0, %v838
    %v840 = vpop.f32.mrf.mxu0
    %841 = vdwg.mxu0
    %842 = vmatpush.bf16.msra.mxu0 %v638
    %843 = vmatpush.bf16.msra.mxu0 %v634
    %844 = vmatpush.bf16.msra.mxu0 %v630
    %845 = vmatpush.bf16.msra.mxu0 %v626
    %846 = vmatpush.bf16.msra.mxu0 %v622
    %847 = vmatpush.bf16.msra.mxu0 %v618
    %848 = vmatpush.bf16.msra.mxu0 %v614
    %849 = vmatpush.bf16.msra.mxu0 %v610
    %850 = vmatmul.bf16.gmra.mxu0 %v796
    %v851 = vpop.f32.mrf.mxu0
    %v852 = vadd.f32 0.0, %v851
    %v853 = vpop.f32.mrf.mxu0
    %854 = vdwg.mxu0
    %v855 = vadd.f32 %v799, %v813
    %v856 = vadd.f32 %v800, %v826
    %v857 = vadd.f32 %v801, %v839
    %v858 = vadd.f32 %v802, %v852
    %v859 = vxor.u32 %v855, 2147483648
    %v860 = vxor.u32 %v856, 2147483648
    %v861 = vxor.u32 %v857, 2147483648
    %v862 = vmul.f32 %v859, 1.442695
    %v863 = vpow.pop %v862
    %v864 = vmul.f32 %v860, 1.442695
    %v865 = vpow.pop %v864
    %v866 = vmul.f32 %v861, 1.442695
    %v867 = vpow.pop %v866
    %v868 = vadd.f32 %v863, 1.0
    %v869 = vadd.f32 %v865, 1.0
    %v870 = vadd.f32 %v867, 1.0
    %v871 = vrcp.pop %v868
    %v872 = vmul.f32 %v868, %v871
    %v873 = vsub.f32 1.0, %v872
    %v874 = vmul.f32 %v871, %v873
    %v875 = vadd.f32 %v871, %v874
    %vm876 = vweird.f32 %v868
    %vm877 = vweird.f32 %v871
    %vm878 = vmor %vm876, %vm877
    %v879 = vsel %vm878, %v871, %v875
    %v880 = vand.u32 2147483647, %v868
    %vm881 = vcmp.eq.f32.partialorder %v880, 8.507059e+37
    %v882 = vand.u32 %v868, 2147483648
    %v883 = vor.u32 1.1754944e-38, %v882
    %v884 = vsel %vm881, %v883, %v879
    %v885 = vmul.f32 1.0, %v884
    %v886 = vrcp.pop %v869
    %v887 = vmul.f32 %v869, %v886
    %v888 = vsub.f32 1.0, %v887
    %v889 = vmul.f32 %v886, %v888
    %v890 = vadd.f32 %v886, %v889
    %vm891 = vweird.f32 %v869
    %vm892 = vweird.f32 %v886
    %vm893 = vmor %vm891, %vm892
    %v894 = vsel %vm893, %v886, %v890
    %v895 = vand.u32 2147483647, %v869
    %vm896 = vcmp.eq.f32.partialorder %v895, 8.507059e+37
    %v897 = vand.u32 %v869, 2147483648
    %v898 = vor.u32 1.1754944e-38, %v897
    %v899 = vsel %vm896, %v898, %v894
    %v900 = vmul.f32 1.0, %v899
    %v901 = vrcp.pop %v870
    %v902 = vmul.f32 %v870, %v901
    %v903 = vsub.f32 1.0, %v902
    %v904 = vmul.f32 %v901, %v903
    %v905 = vadd.f32 %v901, %v904
    %vm906 = vweird.f32 %v870
    %vm907 = vweird.f32 %v901
    %vm908 = vmor %vm906, %vm907
    %v909 = vsel %vm908, %v901, %v905
    %v910 = vand.u32 2147483647, %v870
    %vm911 = vcmp.eq.f32.partialorder %v910, 8.507059e+37
    %v912 = vand.u32 %v870, 2147483648
    %v913 = vor.u32 1.1754944e-38, %v912
    %v914 = vsel %vm911, %v913, %v909
    %v915 = vmul.f32 1.0, %v914
    %v916 = vtanh.pop %v858
    %v917 = vmul.f32 %v900, %v795
    %v918 = vmul.f32 %v885, %v916
    %v919 = vadd.f32 %v917, %v918
    %v920 = vtanh.pop %v919
    %v921 = vmul.f32 %v915, %v920
    %s922 = sadd.s32 %s503, 1
    %p923 = scmp.lt.s32.totalorder %s922, 8
    %s924 = scalar_select %p923, 1, 0
    %v925 = vstv %s924
    %vm926 = vcmp.eq.s32.totalorder %v925, 1
    %v927 = vsel %vm926, %v921, %v794
    %v928 = vsel %vm926, %v919, %v795
    %v929 = vpack.c.bf16 %v927, %v927
    %s930 = scalar_lea.vmem [#allocation13], 4
    %931 = vst [vmem:[%s930] sm:$0xf] %v929
    %s932 = scalar_lea.vmem [#allocation4], 64
    %v933 = vld [vmem:[%s932] sm:$0xff]
    %v934 = vld [vmem:[%s932 + $0x8] sm:$0xff]
    %v935 = vld [vmem:[%s932 + $0x10] sm:$0xff]
    %v936 = vld [vmem:[%s932 + $0x18] sm:$0xff]
    %937 = vmatpush.bf16.msra.mxu0 %v635
    %938 = vmatpush.bf16.msra.mxu0 %v631
    %939 = vmatpush.bf16.msra.mxu0 %v627
    %940 = vmatpush.bf16.msra.mxu0 %v623
    %941 = vmatpush.bf16.msra.mxu0 %v619
    %942 = vmatpush.bf16.msra.mxu0 %v615
    %943 = vmatpush.bf16.msra.mxu0 %v611
    %944 = vmatpush.bf16.msra.mxu0 %v607
    %945 = vmatmul.bf16.gmra.mxu0 %v929
    %v946 = vpop.f32.mrf.mxu0
    %v947 = vadd.f32 0.0, %v946
    %v948 = vpop.f32.mrf.mxu0
    %949 = vdwg.mxu0
    %950 = vmatpush.bf16.msra.mxu0 %v636
    %951 = vmatpush.bf16.msra.mxu0 %v632
    %952 = vmatpush.bf16.msra.mxu0 %v628
    %953 = vmatpush.bf16.msra.mxu0 %v624
    %954 = vmatpush.bf16.msra.mxu0 %v620
    %955 = vmatpush.bf16.msra.mxu0 %v616
    %956 = vmatpush.bf16.msra.mxu0 %v612
    %957 = vmatpush.bf16.msra.mxu0 %v608
    %958 = vmatmul.bf16.gmra.mxu0 %v929
    %v959 = vpop.f32.mrf.mxu0
    %v960 = vadd.f32 0.0, %v959
    %v961 = vpop.f32.mrf.mxu0
    %962 = vdwg.mxu0
    %963 = vmatpush.bf16.msra.mxu0 %v637
    %964 = vmatpush.bf16.msra.mxu0 %v633
    %965 = vmatpush.bf16.msra.mxu0 %v629
    %966 = vmatpush.bf16.msra.mxu0 %v625
    %967 = vmatpush.bf16.msra.mxu0 %v621
    %968 = vmatpush.bf16.msra.mxu0 %v617
    %969 = vmatpush.bf16.msra.mxu0 %v613
    %970 = vmatpush.bf16.msra.mxu0 %v609
    %971 = vmatmul.bf16.gmra.mxu0 %v929
    %v972 = vpop.f32.mrf.mxu0
    %v973 = vadd.f32 0.0, %v972
    %v974 = vpop.f32.mrf.mxu0
    %975 = vdwg.mxu0
    %976 = vmatpush.bf16.msra.mxu0 %v638
    %977 = vmatpush.bf16.msra.mxu0 %v634
    %978 = vmatpush.bf16.msra.mxu0 %v630
    %979 = vmatpush.bf16.msra.mxu0 %v626
    %980 = vmatpush.bf16.msra.mxu0 %v622
    %981 = vmatpush.bf16.msra.mxu0 %v618
    %982 = vmatpush.bf16.msra.mxu0 %v614
    %983 = vmatpush.bf16.msra.mxu0 %v610
    %984 = vmatmul.bf16.gmra.mxu0 %v929
    %v985 = vpop.f32.mrf.mxu0
    %v986 = vadd.f32 0.0, %v985
    %v987 = vpop.f32.mrf.mxu0
    %988 = vdwg.mxu0
    %v989 = vadd.f32 %v933, %v947
    %v990 = vadd.f32 %v934, %v960
    %v991 = vadd.f32 %v935, %v973
    %v992 = vadd.f32 %v936, %v986
    %v993 = vxor.u32 %v989, 2147483648
    %v994 = vxor.u32 %v990, 2147483648
    %v995 = vxor.u32 %v991, 2147483648
    %v996 = vmul.f32 %v993, 1.442695
    %v997 = vpow.pop %v996
    %v998 = vmul.f32 %v994, 1.442695
    %v999 = vpow.pop %v998
    %v1000 = vmul.f32 %v995, 1.442695
    %v1001 = vpow.pop %v1000
    %v1002 = vadd.f32 %v997, 1.0
    %v1003 = vadd.f32 %v999, 1.0
    %v1004 = vadd.f32 %v1001, 1.0
    %v1005 = vrcp.pop %v1002
    %v1006 = vmul.f32 %v1002, %v1005
    %v1007 = vsub.f32 1.0, %v1006
    %v1008 = vmul.f32 %v1005, %v1007
    %v1009 = vadd.f32 %v1005, %v1008
    %vm1010 = vweird.f32 %v1002
    %vm1011 = vweird.f32 %v1005
    %vm1012 = vmor %vm1010, %vm1011
    %v1013 = vsel %vm1012, %v1005, %v1009
    %v1014 = vand.u32 2147483647, %v1002
    %vm1015 = vcmp.eq.f32.partialorder %v1014, 8.507059e+37
    %v1016 = vand.u32 %v1002, 2147483648
    %v1017 = vor.u32 1.1754944e-38, %v1016
    %v1018 = vsel %vm1015, %v1017, %v1013
    %v1019 = vmul.f32 1.0, %v1018
    %v1020 = vrcp.pop %v1003
    %v1021 = vmul.f32 %v1003, %v1020
    %v1022 = vsub.f32 1.0, %v1021
    %v1023 = vmul.f32 %v1020, %v1022
    %v1024 = vadd.f32 %v1020, %v1023
    %vm1025 = vweird.f32 %v1003
    %vm1026 = vweird.f32 %v1020
    %vm1027 = vmor %vm1025, %vm1026
    %v1028 = vsel %vm1027, %v1020, %v1024
    %v1029 = vand.u32 2147483647, %v1003
    %vm1030 = vcmp.eq.f32.partialorder %v1029, 8.507059e+37
    %v1031 = vand.u32 %v1003, 2147483648
    %v1032 = vor.u32 1.1754944e-38, %v1031
    %v1033 = vsel %vm1030, %v1032, %v1028
    %v1034 = vmul.f32 1.0, %v1033
    %v1035 = vrcp.pop %v1004
    %v1036 = vmul.f32 %v1004, %v1035
    %v1037 = vsub.f32 1.0, %v1036
    %v1038 = vmul.f32 %v1035, %v1037
    %v1039 = vadd.f32 %v1035, %v1038
    %vm1040 = vweird.f32 %v1004
    %vm1041 = vweird.f32 %v1035
    %vm1042 = vmor %vm1040, %vm1041
    %v1043 = vsel %vm1042, %v1035, %v1039
    %v1044 = vand.u32 2147483647, %v1004
    %vm1045 = vcmp.eq.f32.partialorder %v1044, 8.507059e+37
    %v1046 = vand.u32 %v1004, 2147483648
    %v1047 = vor.u32 1.1754944e-38, %v1046
    %v1048 = vsel %vm1045, %v1047, %v1043
    %v1049 = vmul.f32 1.0, %v1048
    %v1050 = vtanh.pop %v992
    %v1051 = vmul.f32 %v1034, %v928
    %v1052 = vmul.f32 %v1019, %v1050
    %v1053 = vadd.f32 %v1051, %v1052
    %v1054 = vtanh.pop %v1053
    %v1055 = vmul.f32 %v1049, %v1054
    %s1056 = sadd.s32 %s503, 2
    %p1057 = scmp.lt.s32.totalorder %s1056, 8
    %s1058 = scalar_select %p1057, 1, 0
    %v1059 = vstv %s1058
    %vm1060 = vcmp.eq.s32.totalorder %v1059, 1
    %v1061 = vsel %vm1060, %v1055, %v927
    %v1062 = vsel %vm1060, %v1053, %v928
    %v1063 = vpack.c.bf16 %v1061, %v1061
    %s1064 = scalar_lea.vmem [#allocation13], 8
    %1065 = vst [vmem:[%s1064] sm:$0xf] %v1063
    %s1066 = scalar_lea.vmem [#allocation4], 96
    %v1067 = vld [vmem:[%s1066] sm:$0xff]
    %v1068 = vld [vmem:[%s1066 + $0x8] sm:$0xff]
    %v1069 = vld [vmem:[%s1066 + $0x10] sm:$0xff]
    %v1070 = vld [vmem:[%s1066 + $0x18] sm:$0xff]
    %1071 = vmatpush.bf16.msra.mxu0 %v635
    %1072 = vmatpush.bf16.msra.mxu0 %v631
    %1073 = vmatpush.bf16.msra.mxu0 %v627
    %1074 = vmatpush.bf16.msra.mxu0 %v623
    %1075 = vmatpush.bf16.msra.mxu0 %v619
    %1076 = vmatpush.bf16.msra.mxu0 %v615
    %1077 = vmatpush.bf16.msra.mxu0 %v611
    %1078 = vmatpush.bf16.msra.mxu0 %v607
    %1079 = vmatmul.bf16.gmra.mxu0 %v1063
    %v1080 = vpop.f32.mrf.mxu0
    %v1081 = vadd.f32 0.0, %v1080
    %v1082 = vpop.f32.mrf.mxu0
    %1083 = vdwg.mxu0
    %1084 = vmatpush.bf16.msra.mxu0 %v636
    %1085 = vmatpush.bf16.msra.mxu0 %v632
    %1086 = vmatpush.bf16.msra.mxu0 %v628
    %1087 = vmatpush.bf16.msra.mxu0 %v624
    %1088 = vmatpush.bf16.msra.mxu0 %v620
    %1089 = vmatpush.bf16.msra.mxu0 %v616
    %1090 = vmatpush.bf16.msra.mxu0 %v612
    %1091 = vmatpush.bf16.msra.mxu0 %v608
    %1092 = vmatmul.bf16.gmra.mxu0 %v1063
    %v1093 = vpop.f32.mrf.mxu0
    %v1094 = vadd.f32 0.0, %v1093
    %v1095 = vpop.f32.mrf.mxu0
    %1096 = vdwg.mxu0
    %1097 = vmatpush.bf16.msra.mxu0 %v637
    %1098 = vmatpush.bf16.msra.mxu0 %v633
    %1099 = vmatpush.bf16.msra.mxu0 %v629
    %1100 = vmatpush.bf16.msra.mxu0 %v625
    %1101 = vmatpush.bf16.msra.mxu0 %v621
    %1102 = vmatpush.bf16.msra.mxu0 %v617
    %1103 = vmatpush.bf16.msra.mxu0 %v613
    %1104 = vmatpush.bf16.msra.mxu0 %v609
    %1105 = vmatmul.bf16.gmra.mxu0 %v1063
    %v1106 = vpop.f32.mrf.mxu0
    %v1107 = vadd.f32 0.0, %v1106
    %v1108 = vpop.f32.mrf.mxu0
    %1109 = vdwg.mxu0
    %1110 = vmatpush.bf16.msra.mxu0 %v638
    %1111 = vmatpush.bf16.msra.mxu0 %v634
    %1112 = vmatpush.bf16.msra.mxu0 %v630
    %1113 = vmatpush.bf16.msra.mxu0 %v626
    %1114 = vmatpush.bf16.msra.mxu0 %v622
    %1115 = vmatpush.bf16.msra.mxu0 %v618
    %1116 = vmatpush.bf16.msra.mxu0 %v614
    %1117 = vmatpush.bf16.msra.mxu0 %v610
    %1118 = vmatmul.bf16.gmra.mxu0 %v1063
    %v1119 = vpop.f32.mrf.mxu0
    %v1120 = vadd.f32 0.0, %v1119
    %v1121 = vpop.f32.mrf.mxu0
    %1122 = vdwg.mxu0
    %v1123 = vadd.f32 %v1067, %v1081
    %v1124 = vadd.f32 %v1068, %v1094
    %v1125 = vadd.f32 %v1069, %v1107
    %v1126 = vadd.f32 %v1070, %v1120
    %v1127 = vxor.u32 %v1123, 2147483648
    %v1128 = vxor.u32 %v1124, 2147483648
    %v1129 = vxor.u32 %v1125, 2147483648
    %v1130 = vmul.f32 %v1127, 1.442695
    %v1131 = vpow.pop %v1130
    %v1132 = vmul.f32 %v1128, 1.442695
    %v1133 = vpow.pop %v1132
    %v1134 = vmul.f32 %v1129, 1.442695
    %v1135 = vpow.pop %v1134
    %v1136 = vadd.f32 %v1131, 1.0
    %v1137 = vadd.f32 %v1133, 1.0
    %v1138 = vadd.f32 %v1135, 1.0
    %v1139 = vrcp.pop %v1136
    %v1140 = vmul.f32 %v1136, %v1139
    %v1141 = vsub.f32 1.0, %v1140
    %v1142 = vmul.f32 %v1139, %v1141
    %v1143 = vadd.f32 %v1139, %v1142
    %vm1144 = vweird.f32 %v1136
    %vm1145 = vweird.f32 %v1139
    %vm1146 = vmor %vm1144, %vm1145
    %v1147 = vsel %vm1146, %v1139, %v1143
    %v1148 = vand.u32 2147483647, %v1136
    %vm1149 = vcmp.eq.f32.partialorder %v1148, 8.507059e+37
    %v1150 = vand.u32 %v1136, 2147483648
    %v1151 = vor.u32 1.1754944e-38, %v1150
    %v1152 = vsel %vm1149, %v1151, %v1147
    %v1153 = vmul.f32 1.0, %v1152
    %v1154 = vrcp.pop %v1137
    %v1155 = vmul.f32 %v1137, %v1154
    %v1156 = vsub.f32 1.0, %v1155
    %v1157 = vmul.f32 %v1154, %v1156
    %v1158 = vadd.f32 %v1154, %v1157
    %vm1159 = vweird.f32 %v1137
    %vm1160 = vweird.f32 %v1154
    %vm1161 = vmor %vm1159, %vm1160
    %v1162 = vsel %vm1161, %v1154, %v1158
    %v1163 = vand.u32 2147483647, %v1137
    %vm1164 = vcmp.eq.f32.partialorder %v1163, 8.507059e+37
    %v1165 = vand.u32 %v1137, 2147483648
    %v1166 = vor.u32 1.1754944e-38, %v1165
    %v1167 = vsel %vm1164, %v1166, %v1162
    %v1168 = vmul.f32 1.0, %v1167
    %v1169 = vrcp.pop %v1138
    %v1170 = vmul.f32 %v1138, %v1169
    %v1171 = vsub.f32 1.0, %v1170
    %v1172 = vmul.f32 %v1169, %v1171
    %v1173 = vadd.f32 %v1169, %v1172
    %vm1174 = vweird.f32 %v1138
    %vm1175 = vweird.f32 %v1169
    %vm1176 = vmor %vm1174, %vm1175
    %v1177 = vsel %vm1176, %v1169, %v1173
    %v1178 = vand.u32 2147483647, %v1138
    %vm1179 = vcmp.eq.f32.partialorder %v1178, 8.507059e+37
    %v1180 = vand.u32 %v1138, 2147483648
    %v1181 = vor.u32 1.1754944e-38, %v1180
    %v1182 = vsel %vm1179, %v1181, %v1177
    %v1183 = vmul.f32 1.0, %v1182
    %v1184 = vtanh.pop %v1126
    %v1185 = vmul.f32 %v1168, %v1062
    %v1186 = vmul.f32 %v1153, %v1184
    %v1187 = vadd.f32 %v1185, %v1186
    %v1188 = vtanh.pop %v1187
    %v1189 = vmul.f32 %v1183, %v1188
    %s1190 = sadd.s32 %s503, 3
    %p1191 = scmp.lt.s32.totalorder %s1190, 8
    %s1192 = scalar_select %p1191, 1, 0
    %v1193 = vstv %s1192
    %vm1194 = vcmp.eq.s32.totalorder %v1193, 1
    %v1195 = vsel %vm1194, %v1189, %v1061
    %v1196 = vsel %vm1194, %v1187, %v1062
    %v1197 = vpack.c.bf16 %v1195, %v1195
    %s1198 = scalar_lea.vmem [#allocation13], 12
    %1199 = vst [vmem:[%s1198] sm:$0xf] %v1197
    %s1200 = scalar_lea.vmem [#allocation4], 128
    %v1201 = vld [vmem:[%s1200] sm:$0xff]
    %v1202 = vld [vmem:[%s1200 + $0x8] sm:$0xff]
    %v1203 = vld [vmem:[%s1200 + $0x10] sm:$0xff]
    %v1204 = vld [vmem:[%s1200 + $0x18] sm:$0xff]
    %1205 = vmatpush.bf16.msra.mxu0 %v635
    %1206 = vmatpush.bf16.msra.mxu0 %v631
    %1207 = vmatpush.bf16.msra.mxu0 %v627
    %1208 = vmatpush.bf16.msra.mxu0 %v623
    %1209 = vmatpush.bf16.msra.mxu0 %v619
    %1210 = vmatpush.bf16.msra.mxu0 %v615
    %1211 = vmatpush.bf16.msra.mxu0 %v611
    %1212 = vmatpush.bf16.msra.mxu0 %v607
    %1213 = vmatmul.bf16.gmra.mxu0 %v1197
    %v1214 = vpop.f32.mrf.mxu0
    %v1215 = vadd.f32 0.0, %v1214
    %v1216 = vpop.f32.mrf.mxu0
    %1217 = vdwg.mxu0
    %1218 = vmatpush.bf16.msra.mxu0 %v636
    %1219 = vmatpush.bf16.msra.mxu0 %v632
    %1220 = vmatpush.bf16.msra.mxu0 %v628
    %1221 = vmatpush.bf16.msra.mxu0 %v624
    %1222 = vmatpush.bf16.msra.mxu0 %v620
    %1223 = vmatpush.bf16.msra.mxu0 %v616
    %1224 = vmatpush.bf16.msra.mxu0 %v612
    %1225 = vmatpush.bf16.msra.mxu0 %v608
    %1226 = vmatmul.bf16.gmra.mxu0 %v1197
    %v1227 = vpop.f32.mrf.mxu0
    %v1228 = vadd.f32 0.0, %v1227
    %v1229 = vpop.f32.mrf.mxu0
    %1230 = vdwg.mxu0
    %1231 = vmatpush.bf16.msra.mxu0 %v637
    %1232 = vmatpush.bf16.msra.mxu0 %v633
    %1233 = vmatpush.bf16.msra.mxu0 %v629
    %1234 = vmatpush.bf16.msra.mxu0 %v625
    %1235 = vmatpush.bf16.msra.mxu0 %v621
    %1236 = vmatpush.bf16.msra.mxu0 %v617
    %1237 = vmatpush.bf16.msra.mxu0 %v613
    %1238 = vmatpush.bf16.msra.mxu0 %v609
    %1239 = vmatmul.bf16.gmra.mxu0 %v1197
    %v1240 = vpop.f32.mrf.mxu0
    %v1241 = vadd.f32 0.0, %v1240
    %v1242 = vpop.f32.mrf.mxu0
    %1243 = vdwg.mxu0
    %1244 = vmatpush.bf16.msra.mxu0 %v638
    %1245 = vmatpush.bf16.msra.mxu0 %v634
    %1246 = vmatpush.bf16.msra.mxu0 %v630
    %1247 = vmatpush.bf16.msra.mxu0 %v626
    %1248 = vmatpush.bf16.msra.mxu0 %v622
    %1249 = vmatpush.bf16.msra.mxu0 %v618
    %1250 = vmatpush.bf16.msra.mxu0 %v614
    %1251 = vmatpush.bf16.msra.mxu0 %v610
    %1252 = vmatmul.bf16.gmra.mxu0 %v1197
    %v1253 = vpop.f32.mrf.mxu0
    %v1254 = vadd.f32 0.0, %v1253
    %v1255 = vpop.f32.mrf.mxu0
    %1256 = vdwg.mxu0
    %v1257 = vadd.f32 %v1201, %v1215
    %v1258 = vadd.f32 %v1202, %v1228
    %v1259 = vadd.f32 %v1203, %v1241
    %v1260 = vadd.f32 %v1204, %v1254
    %v1261 = vxor.u32 %v1257, 2147483648
    %v1262 = vxor.u32 %v1258, 2147483648
    %v1263 = vxor.u32 %v1259, 2147483648
    %v1264 = vmul.f32 %v1261, 1.442695
    %v1265 = vpow.pop %v1264
    %v1266 = vmul.f32 %v1262, 1.442695
    %v1267 = vpow.pop %v1266
    %v1268 = vmul.f32 %v1263, 1.442695
    %v1269 = vpow.pop %v1268
    %v1270 = vadd.f32 %v1265, 1.0
    %v1271 = vadd.f32 %v1267, 1.0
    %v1272 = vadd.f32 %v1269, 1.0
    %v1273 = vrcp.pop %v1270
    %v1274 = vmul.f32 %v1270, %v1273
    %v1275 = vsub.f32 1.0, %v1274
    %v1276 = vmul.f32 %v1273, %v1275
    %v1277 = vadd.f32 %v1273, %v1276
    %vm1278 = vweird.f32 %v1270
    %vm1279 = vweird.f32 %v1273
    %vm1280 = vmor %vm1278, %vm1279
    %v1281 = vsel %vm1280, %v1273, %v1277
    %v1282 = vand.u32 2147483647, %v1270
    %vm1283 = vcmp.eq.f32.partialorder %v1282, 8.507059e+37
    %v1284 = vand.u32 %v1270, 2147483648
    %v1285 = vor.u32 1.1754944e-38, %v1284
    %v1286 = vsel %vm1283, %v1285, %v1281
    %v1287 = vmul.f32 1.0, %v1286
    %v1288 = vrcp.pop %v1271
    %v1289 = vmul.f32 %v1271, %v1288
    %v1290 = vsub.f32 1.0, %v1289
    %v1291 = vmul.f32 %v1288, %v1290
    %v1292 = vadd.f32 %v1288, %v1291
    %vm1293 = vweird.f32 %v1271
    %vm1294 = vweird.f32 %v1288
    %vm1295 = vmor %vm1293, %vm1294
    %v1296 = vsel %vm1295, %v1288, %v1292
    %v1297 = vand.u32 2147483647, %v1271
    %vm1298 = vcmp.eq.f32.partialorder %v1297, 8.507059e+37
    %v1299 = vand.u32 %v1271, 2147483648
    %v1300 = vor.u32 1.1754944e-38, %v1299
    %v1301 = vsel %vm1298, %v1300, %v1296
    %v1302 = vmul.f32 1.0, %v1301
    %v1303 = vrcp.pop %v1272
    %v1304 = vmul.f32 %v1272, %v1303
    %v1305 = vsub.f32 1.0, %v1304
    %v1306 = vmul.f32 %v1303, %v1305
    %v1307 = vadd.f32 %v1303, %v1306
    %vm1308 = vweird.f32 %v1272
    %vm1309 = vweird.f32 %v1303
    %vm1310 = vmor %vm1308, %vm1309
    %v1311 = vsel %vm1310, %v1303, %v1307
    %v1312 = vand.u32 2147483647, %v1272
    %vm1313 = vcmp.eq.f32.partialorder %v1312, 8.507059e+37
    %v1314 = vand.u32 %v1272, 2147483648
    %v1315 = vor.u32 1.1754944e-38, %v1314
    %v1316 = vsel %vm1313, %v1315, %v1311
    %v1317 = vmul.f32 1.0, %v1316
    %v1318 = vtanh.pop %v1260
    %v1319 = vmul.f32 %v1302, %v1196
    %v1320 = vmul.f32 %v1287, %v1318
    %v1321 = vadd.f32 %v1319, %v1320
    %v1322 = vtanh.pop %v1321
    %v1323 = vmul.f32 %v1317, %v1322
    %s1324 = sadd.s32 %s503, 4
    %p1325 = scmp.lt.s32.totalorder %s1324, 8
    %s1326 = scalar_select %p1325, 1, 0
    %v1327 = vstv %s1326
    %vm1328 = vcmp.eq.s32.totalorder %v1327, 1
    %v1329 = vsel %vm1328, %v1323, %v1195
    %v1330 = vsel %vm1328, %v1321, %v1196
    %v1331 = vpack.c.bf16 %v1329, %v1329
    %s1332 = scalar_lea.vmem [#allocation13], 16
    %1333 = vst [vmem:[%s1332] sm:$0xf] %v1331
    %s1334 = scalar_lea.vmem [#allocation4], 160
    %v1335 = vld [vmem:[%s1334] sm:$0xff]
    %v1336 = vld [vmem:[%s1334 + $0x8] sm:$0xff]
    %v1337 = vld [vmem:[%s1334 + $0x10] sm:$0xff]
    %v1338 = vld [vmem:[%s1334 + $0x18] sm:$0xff]
    %1339 = vmatpush.bf16.msra.mxu0 %v635
    %1340 = vmatpush.bf16.msra.mxu0 %v631
    %1341 = vmatpush.bf16.msra.mxu0 %v627
    %1342 = vmatpush.bf16.msra.mxu0 %v623
    %1343 = vmatpush.bf16.msra.mxu0 %v619
    %1344 = vmatpush.bf16.msra.mxu0 %v615
    %1345 = vmatpush.bf16.msra.mxu0 %v611
    %1346 = vmatpush.bf16.msra.mxu0 %v607
    %1347 = vmatmul.bf16.gmra.mxu0 %v1331
    %v1348 = vpop.f32.mrf.mxu0
    %v1349 = vadd.f32 0.0, %v1348
    %v1350 = vpop.f32.mrf.mxu0
    %1351 = vdwg.mxu0
    %1352 = vmatpush.bf16.msra.mxu0 %v636
    %1353 = vmatpush.bf16.msra.mxu0 %v632
    %1354 = vmatpush.bf16.msra.mxu0 %v628
    %1355 = vmatpush.bf16.msra.mxu0 %v624
    %1356 = vmatpush.bf16.msra.mxu0 %v620
    %1357 = vmatpush.bf16.msra.mxu0 %v616
    %1358 = vmatpush.bf16.msra.mxu0 %v612
    %1359 = vmatpush.bf16.msra.mxu0 %v608
    %1360 = vmatmul.bf16.gmra.mxu0 %v1331
    %v1361 = vpop.f32.mrf.mxu0
    %v1362 = vadd.f32 0.0, %v1361
    %v1363 = vpop.f32.mrf.mxu0
    %1364 = vdwg.mxu0
    %1365 = vmatpush.bf16.msra.mxu0 %v637
    %1366 = vmatpush.bf16.msra.mxu0 %v633
    %1367 = vmatpush.bf16.msra.mxu0 %v629
    %1368 = vmatpush.bf16.msra.mxu0 %v625
    %1369 = vmatpush.bf16.msra.mxu0 %v621
    %1370 = vmatpush.bf16.msra.mxu0 %v617
    %1371 = vmatpush.bf16.msra.mxu0 %v613
    %1372 = vmatpush.bf16.msra.mxu0 %v609
    %1373 = vmatmul.bf16.gmra.mxu0 %v1331
    %v1374 = vpop.f32.mrf.mxu0
    %v1375 = vadd.f32 0.0, %v1374
    %v1376 = vpop.f32.mrf.mxu0
    %1377 = vdwg.mxu0
    %1378 = vmatpush.bf16.msra.mxu0 %v638
    %1379 = vmatpush.bf16.msra.mxu0 %v634
    %1380 = vmatpush.bf16.msra.mxu0 %v630
    %1381 = vmatpush.bf16.msra.mxu0 %v626
    %1382 = vmatpush.bf16.msra.mxu0 %v622
    %1383 = vmatpush.bf16.msra.mxu0 %v618
    %1384 = vmatpush.bf16.msra.mxu0 %v614
    %1385 = vmatpush.bf16.msra.mxu0 %v610
    %1386 = vmatmul.bf16.gmra.mxu0 %v1331
    %v1387 = vpop.f32.mrf.mxu0
    %v1388 = vadd.f32 0.0, %v1387
    %v1389 = vpop.f32.mrf.mxu0
    %1390 = vdwg.mxu0
    %v1391 = vadd.f32 %v1335, %v1349
    %v1392 = vadd.f32 %v1336, %v1362
    %v1393 = vadd.f32 %v1337, %v1375
    %v1394 = vadd.f32 %v1338, %v1388
    %v1395 = vxor.u32 %v1391, 2147483648
    %v1396 = vxor.u32 %v1392, 2147483648
    %v1397 = vxor.u32 %v1393, 2147483648
    %v1398 = vmul.f32 %v1395, 1.442695
    %v1399 = vpow.pop %v1398
    %v1400 = vmul.f32 %v1396, 1.442695
    %v1401 = vpow.pop %v1400
    %v1402 = vmul.f32 %v1397, 1.442695
    %v1403 = vpow.pop %v1402
    %v1404 = vadd.f32 %v1399, 1.0
    %v1405 = vadd.f32 %v1401, 1.0
    %v1406 = vadd.f32 %v1403, 1.0
    %v1407 = vrcp.pop %v1404
    %v1408 = vmul.f32 %v1404, %v1407
    %v1409 = vsub.f32 1.0, %v1408
    %v1410 = vmul.f32 %v1407, %v1409
    %v1411 = vadd.f32 %v1407, %v1410
    %vm1412 = vweird.f32 %v1404
    %vm1413 = vweird.f32 %v1407
    %vm1414 = vmor %vm1412, %vm1413
    %v1415 = vsel %vm1414, %v1407, %v1411
    %v1416 = vand.u32 2147483647, %v1404
    %vm1417 = vcmp.eq.f32.partialorder %v1416, 8.507059e+37
    %v1418 = vand.u32 %v1404, 2147483648
    %v1419 = vor.u32 1.1754944e-38, %v1418
    %v1420 = vsel %vm1417, %v1419, %v1415
    %v1421 = vmul.f32 1.0, %v1420
    %v1422 = vrcp.pop %v1405
    %v1423 = vmul.f32 %v1405, %v1422
    %v1424 = vsub.f32 1.0, %v1423
    %v1425 = vmul.f32 %v1422, %v1424
    %v1426 = vadd.f32 %v1422, %v1425
    %vm1427 = vweird.f32 %v1405
    %vm1428 = vweird.f32 %v1422
    %vm1429 = vmor %vm1427, %vm1428
    %v1430 = vsel %vm1429, %v1422, %v1426
    %v1431 = vand.u32 2147483647, %v1405
    %vm1432 = vcmp.eq.f32.partialorder %v1431, 8.507059e+37
    %v1433 = vand.u32 %v1405, 2147483648
    %v1434 = vor.u32 1.1754944e-38, %v1433
    %v1435 = vsel %vm1432, %v1434, %v1430
    %v1436 = vmul.f32 1.0, %v1435
    %v1437 = vrcp.pop %v1406
    %v1438 = vmul.f32 %v1406, %v1437
    %v1439 = vsub.f32 1.0, %v1438
    %v1440 = vmul.f32 %v1437, %v1439
    %v1441 = vadd.f32 %v1437, %v1440
    %vm1442 = vweird.f32 %v1406
    %vm1443 = vweird.f32 %v1437
    %vm1444 = vmor %vm1442, %vm1443
    %v1445 = vsel %vm1444, %v1437, %v1441
    %v1446 = vand.u32 2147483647, %v1406
    %vm1447 = vcmp.eq.f32.partialorder %v1446, 8.507059e+37
    %v1448 = vand.u32 %v1406, 2147483648
    %v1449 = vor.u32 1.1754944e-38, %v1448
    %v1450 = vsel %vm1447, %v1449, %v1445
    %v1451 = vmul.f32 1.0, %v1450
    %v1452 = vtanh.pop %v1394
    %v1453 = vmul.f32 %v1436, %v1330
    %v1454 = vmul.f32 %v1421, %v1452
    %v1455 = vadd.f32 %v1453, %v1454
    %v1456 = vtanh.pop %v1455
    %v1457 = vmul.f32 %v1451, %v1456
    %s1458 = sadd.s32 %s503, 5
    %p1459 = scmp.lt.s32.totalorder %s1458, 8
    %s1460 = scalar_select %p1459, 1, 0
    %v1461 = vstv %s1460
    %vm1462 = vcmp.eq.s32.totalorder %v1461, 1
    %v1463 = vsel %vm1462, %v1457, %v1329
    %v1464 = vsel %vm1462, %v1455, %v1330
    %v1465 = vpack.c.bf16 %v1463, %v1463
    %s1466 = scalar_lea.vmem [#allocation13], 20
    %1467 = vst [vmem:[%s1466] sm:$0xf] %v1465
    %s1468 = scalar_lea.vmem [#allocation4], 192
    %v1469 = vld [vmem:[%s1468] sm:$0xff]
    %v1470 = vld [vmem:[%s1468 + $0x8] sm:$0xff]
    %v1471 = vld [vmem:[%s1468 + $0x10] sm:$0xff]
    %v1472 = vld [vmem:[%s1468 + $0x18] sm:$0xff]
    %1473 = vmatpush.bf16.msra.mxu0 %v635
    %1474 = vmatpush.bf16.msra.mxu0 %v631
    %1475 = vmatpush.bf16.msra.mxu0 %v627
    %1476 = vmatpush.bf16.msra.mxu0 %v623
    %1477 = vmatpush.bf16.msra.mxu0 %v619
    %1478 = vmatpush.bf16.msra.mxu0 %v615
    %1479 = vmatpush.bf16.msra.mxu0 %v611
    %1480 = vmatpush.bf16.msra.mxu0 %v607
    %1481 = vmatmul.bf16.gmra.mxu0 %v1465
    %v1482 = vpop.f32.mrf.mxu0
    %v1483 = vadd.f32 0.0, %v1482
    %v1484 = vpop.f32.mrf.mxu0
    %1485 = vdwg.mxu0
    %1486 = vmatpush.bf16.msra.mxu0 %v636
    %1487 = vmatpush.bf16.msra.mxu0 %v632
    %1488 = vmatpush.bf16.msra.mxu0 %v628
    %1489 = vmatpush.bf16.msra.mxu0 %v624
    %1490 = vmatpush.bf16.msra.mxu0 %v620
    %1491 = vmatpush.bf16.msra.mxu0 %v616
    %1492 = vmatpush.bf16.msra.mxu0 %v612
    %1493 = vmatpush.bf16.msra.mxu0 %v608
    %1494 = vmatmul.bf16.gmra.mxu0 %v1465
    %v1495 = vpop.f32.mrf.mxu0
    %v1496 = vadd.f32 0.0, %v1495
    %v1497 = vpop.f32.mrf.mxu0
    %1498 = vdwg.mxu0
    %1499 = vmatpush.bf16.msra.mxu0 %v637
    %1500 = vmatpush.bf16.msra.mxu0 %v633
    %1501 = vmatpush.bf16.msra.mxu0 %v629
    %1502 = vmatpush.bf16.msra.mxu0 %v625
    %1503 = vmatpush.bf16.msra.mxu0 %v621
    %1504 = vmatpush.bf16.msra.mxu0 %v617
    %1505 = vmatpush.bf16.msra.mxu0 %v613
    %1506 = vmatpush.bf16.msra.mxu0 %v609
    %1507 = vmatmul.bf16.gmra.mxu0 %v1465
    %v1508 = vpop.f32.mrf.mxu0
    %v1509 = vadd.f32 0.0, %v1508
    %v1510 = vpop.f32.mrf.mxu0
    %1511 = vdwg.mxu0
    %1512 = vmatpush.bf16.msra.mxu0 %v638
    %1513 = vmatpush.bf16.msra.mxu0 %v634
    %1514 = vmatpush.bf16.msra.mxu0 %v630
    %1515 = vmatpush.bf16.msra.mxu0 %v626
    %1516 = vmatpush.bf16.msra.mxu0 %v622
    %1517 = vmatpush.bf16.msra.mxu0 %v618
    %1518 = vmatpush.bf16.msra.mxu0 %v614
    %1519 = vmatpush.bf16.msra.mxu0 %v610
    %1520 = vmatmul.bf16.gmra.mxu0 %v1465
    %v1521 = vpop.f32.mrf.mxu0
    %v1522 = vadd.f32 0.0, %v1521
    %v1523 = vpop.f32.mrf.mxu0
    %1524 = vdwg.mxu0
    %v1525 = vadd.f32 %v1469, %v1483
    %v1526 = vadd.f32 %v1470, %v1496
    %v1527 = vadd.f32 %v1471, %v1509
    %v1528 = vadd.f32 %v1472, %v1522
    %v1529 = vxor.u32 %v1525, 2147483648
    %v1530 = vxor.u32 %v1526, 2147483648
    %v1531 = vxor.u32 %v1527, 2147483648
    %v1532 = vmul.f32 %v1529, 1.442695
    %v1533 = vpow.pop %v1532
    %v1534 = vmul.f32 %v1530, 1.442695
    %v1535 = vpow.pop %v1534
    %v1536 = vmul.f32 %v1531, 1.442695
    %v1537 = vpow.pop %v1536
    %v1538 = vadd.f32 %v1533, 1.0
    %v1539 = vadd.f32 %v1535, 1.0
    %v1540 = vadd.f32 %v1537, 1.0
    %v1541 = vrcp.pop %v1538
    %v1542 = vmul.f32 %v1538, %v1541
    %v1543 = vsub.f32 1.0, %v1542
    %v1544 = vmul.f32 %v1541, %v1543
    %v1545 = vadd.f32 %v1541, %v1544
    %vm1546 = vweird.f32 %v1538
    %vm1547 = vweird.f32 %v1541
    %vm1548 = vmor %vm1546, %vm1547
    %v1549 = vsel %vm1548, %v1541, %v1545
    %v1550 = vand.u32 2147483647, %v1538
    %vm1551 = vcmp.eq.f32.partialorder %v1550, 8.507059e+37
    %v1552 = vand.u32 %v1538, 2147483648
    %v1553 = vor.u32 1.1754944e-38, %v1552
    %v1554 = vsel %vm1551, %v1553, %v1549
    %v1555 = vmul.f32 1.0, %v1554
    %v1556 = vrcp.pop %v1539
    %v1557 = vmul.f32 %v1539, %v1556
    %v1558 = vsub.f32 1.0, %v1557
    %v1559 = vmul.f32 %v1556, %v1558
    %v1560 = vadd.f32 %v1556, %v1559
    %vm1561 = vweird.f32 %v1539
    %vm1562 = vweird.f32 %v1556
    %vm1563 = vmor %vm1561, %vm1562
    %v1564 = vsel %vm1563, %v1556, %v1560
    %v1565 = vand.u32 2147483647, %v1539
    %vm1566 = vcmp.eq.f32.partialorder %v1565, 8.507059e+37
    %v1567 = vand.u32 %v1539, 2147483648
    %v1568 = vor.u32 1.1754944e-38, %v1567
    %v1569 = vsel %vm1566, %v1568, %v1564
    %v1570 = vmul.f32 1.0, %v1569
    %v1571 = vrcp.pop %v1540
    %v1572 = vmul.f32 %v1540, %v1571
    %v1573 = vsub.f32 1.0, %v1572
    %v1574 = vmul.f32 %v1571, %v1573
    %v1575 = vadd.f32 %v1571, %v1574
    %vm1576 = vweird.f32 %v1540
    %vm1577 = vweird.f32 %v1571
    %vm1578 = vmor %vm1576, %vm1577
    %v1579 = vsel %vm1578, %v1571, %v1575
    %v1580 = vand.u32 2147483647, %v1540
    %vm1581 = vcmp.eq.f32.partialorder %v1580, 8.507059e+37
    %v1582 = vand.u32 %v1540, 2147483648
    %v1583 = vor.u32 1.1754944e-38, %v1582
    %v1584 = vsel %vm1581, %v1583, %v1579
    %v1585 = vmul.f32 1.0, %v1584
    %v1586 = vtanh.pop %v1528
    %v1587 = vmul.f32 %v1570, %v1464
    %v1588 = vmul.f32 %v1555, %v1586
    %v1589 = vadd.f32 %v1587, %v1588
    %v1590 = vtanh.pop %v1589
    %v1591 = vmul.f32 %v1585, %v1590
    %s1592 = sadd.s32 %s503, 6
    %p1593 = scmp.lt.s32.totalorder %s1592, 8
    %s1594 = scalar_select %p1593, 1, 0
    %v1595 = vstv %s1594
    %vm1596 = vcmp.eq.s32.totalorder %v1595, 1
    %v1597 = vsel %vm1596, %v1591, %v1463
    %v1598 = vsel %vm1596, %v1589, %v1464
    %v1599 = vpack.c.bf16 %v1597, %v1597
    %s1600 = scalar_lea.vmem [#allocation13], 24
    %1601 = vst [vmem:[%s1600] sm:$0xf] %v1599
    %s1602 = scalar_lea.vmem [#allocation4], 224
    %v1603 = vld [vmem:[%s1602] sm:$0xff]
    %v1604 = vld [vmem:[%s1602 + $0x8] sm:$0xff]
    %v1605 = vld [vmem:[%s1602 + $0x10] sm:$0xff]
    %v1606 = vld [vmem:[%s1602 + $0x18] sm:$0xff]
    %1607 = vmatpush.bf16.msra.mxu0 %v635
    %1608 = vmatpush.bf16.msra.mxu0 %v631
    %1609 = vmatpush.bf16.msra.mxu0 %v627
    %1610 = vmatpush.bf16.msra.mxu0 %v623
    %1611 = vmatpush.bf16.msra.mxu0 %v619
    %1612 = vmatpush.bf16.msra.mxu0 %v615
    %1613 = vmatpush.bf16.msra.mxu0 %v611
    %1614 = vmatpush.bf16.msra.mxu0 %v607
    %1615 = vmatmul.bf16.gmra.mxu0 %v1599
    %v1616 = vpop.f32.mrf.mxu0
    %v1617 = vadd.f32 0.0, %v1616
    %v1618 = vpop.f32.mrf.mxu0
    %1619 = vdwg.mxu0
    %1620 = vmatpush.bf16.msra.mxu0 %v636
    %1621 = vmatpush.bf16.msra.mxu0 %v632
    %1622 = vmatpush.bf16.msra.mxu0 %v628
    %1623 = vmatpush.bf16.msra.mxu0 %v624
    %1624 = vmatpush.bf16.msra.mxu0 %v620
    %1625 = vmatpush.bf16.msra.mxu0 %v616
    %1626 = vmatpush.bf16.msra.mxu0 %v612
    %1627 = vmatpush.bf16.msra.mxu0 %v608
    %1628 = vmatmul.bf16.gmra.mxu0 %v1599
    %v1629 = vpop.f32.mrf.mxu0
    %v1630 = vadd.f32 0.0, %v1629
    %v1631 = vpop.f32.mrf.mxu0
    %1632 = vdwg.mxu0
    %1633 = vmatpush.bf16.msra.mxu0 %v637
    %1634 = vmatpush.bf16.msra.mxu0 %v633
    %1635 = vmatpush.bf16.msra.mxu0 %v629
    %1636 = vmatpush.bf16.msra.mxu0 %v625
    %1637 = vmatpush.bf16.msra.mxu0 %v621
    %1638 = vmatpush.bf16.msra.mxu0 %v617
    %1639 = vmatpush.bf16.msra.mxu0 %v613
    %1640 = vmatpush.bf16.msra.mxu0 %v609
    %1641 = vmatmul.bf16.gmra.mxu0 %v1599
    %v1642 = vpop.f32.mrf.mxu0
    %v1643 = vadd.f32 0.0, %v1642
    %v1644 = vpop.f32.mrf.mxu0
    %1645 = vdwg.mxu0
    %1646 = vmatpush.bf16.msra.mxu0 %v638
    %1647 = vmatpush.bf16.msra.mxu0 %v634
    %1648 = vmatpush.bf16.msra.mxu0 %v630
    %1649 = vmatpush.bf16.msra.mxu0 %v626
    %1650 = vmatpush.bf16.msra.mxu0 %v622
    %1651 = vmatpush.bf16.msra.mxu0 %v618
    %1652 = vmatpush.bf16.msra.mxu0 %v614
    %1653 = vmatpush.bf16.msra.mxu0 %v610
    %1654 = vmatmul.bf16.gmra.mxu0 %v1599
    %v1655 = vpop.f32.mrf.mxu0
    %v1656 = vadd.f32 0.0, %v1655
    %v1657 = vpop.f32.mrf.mxu0
    %1658 = vdwg.mxu0
    %v1659 = vadd.f32 %v1603, %v1617
    %v1660 = vadd.f32 %v1604, %v1630
    %v1661 = vadd.f32 %v1605, %v1643
    %v1662 = vadd.f32 %v1606, %v1656
    %v1663 = vxor.u32 %v1659, 2147483648
    %v1664 = vxor.u32 %v1660, 2147483648
    %v1665 = vxor.u32 %v1661, 2147483648
    %v1666 = vmul.f32 %v1663, 1.442695
    %v1667 = vpow.pop %v1666
    %v1668 = vmul.f32 %v1664, 1.442695
    %v1669 = vpow.pop %v1668
    %v1670 = vmul.f32 %v1665, 1.442695
    %v1671 = vpow.pop %v1670
    %v1672 = vadd.f32 %v1667, 1.0
    %v1673 = vadd.f32 %v1669, 1.0
    %v1674 = vadd.f32 %v1671, 1.0
    %v1675 = vrcp.pop %v1672
    %v1676 = vmul.f32 %v1672, %v1675
    %v1677 = vsub.f32 1.0, %v1676
    %v1678 = vmul.f32 %v1675, %v1677
    %v1679 = vadd.f32 %v1675, %v1678
    %vm1680 = vweird.f32 %v1672
    %vm1681 = vweird.f32 %v1675
    %vm1682 = vmor %vm1680, %vm1681
    %v1683 = vsel %vm1682, %v1675, %v1679
    %v1684 = vand.u32 2147483647, %v1672
    %vm1685 = vcmp.eq.f32.partialorder %v1684, 8.507059e+37
    %v1686 = vand.u32 %v1672, 2147483648
    %v1687 = vor.u32 1.1754944e-38, %v1686
    %v1688 = vsel %vm1685, %v1687, %v1683
    %v1689 = vmul.f32 1.0, %v1688
    %v1690 = vrcp.pop %v1673
    %v1691 = vmul.f32 %v1673, %v1690
    %v1692 = vsub.f32 1.0, %v1691
    %v1693 = vmul.f32 %v1690, %v1692
    %v1694 = vadd.f32 %v1690, %v1693
    %vm1695 = vweird.f32 %v1673
    %vm1696 = vweird.f32 %v1690
    %vm1697 = vmor %vm1695, %vm1696
    %v1698 = vsel %vm1697, %v1690, %v1694
    %v1699 = vand.u32 2147483647, %v1673
    %vm1700 = vcmp.eq.f32.partialorder %v1699, 8.507059e+37
    %v1701 = vand.u32 %v1673, 2147483648
    %v1702 = vor.u32 1.1754944e-38, %v1701
    %v1703 = vsel %vm1700, %v1702, %v1698
    %v1704 = vmul.f32 1.0, %v1703
    %v1705 = vrcp.pop %v1674
    %v1706 = vmul.f32 %v1674, %v1705
    %v1707 = vsub.f32 1.0, %v1706
    %v1708 = vmul.f32 %v1705, %v1707
    %v1709 = vadd.f32 %v1705, %v1708
    %vm1710 = vweird.f32 %v1674
    %vm1711 = vweird.f32 %v1705
    %vm1712 = vmor %vm1710, %vm1711
    %v1713 = vsel %vm1712, %v1705, %v1709
    %v1714 = vand.u32 2147483647, %v1674
    %vm1715 = vcmp.eq.f32.partialorder %v1714, 8.507059e+37
    %v1716 = vand.u32 %v1674, 2147483648
    %v1717 = vor.u32 1.1754944e-38, %v1716
    %v1718 = vsel %vm1715, %v1717, %v1713
    %v1719 = vmul.f32 1.0, %v1718
    %v1720 = vtanh.pop %v1662
    %v1721 = vmul.f32 %v1704, %v1598
    %v1722 = vmul.f32 %v1689, %v1720
    %v1723 = vadd.f32 %v1721, %v1722
    %v1724 = vtanh.pop %v1723
    %v1725 = vmul.f32 %v1719, %v1724
    %s1726 = sadd.s32 %s503, 7
    %p1727 = scmp.lt.s32.totalorder %s1726, 8
    %s1728 = scalar_select %p1727, 1, 0
    %v1729 = vstv %s1728
    %vm1730 = vcmp.eq.s32.totalorder %v1729, 1
    %v1731 = vsel %vm1730, %v1725, %v1597
    %v1732 = vsel %vm1730, %v1723, %v1598
    %v1733 = vpack.c.bf16 %v1731, %v1731
    %s1734 = scalar_lea.vmem [#allocation13], 28
    %1735 = vst [vmem:[%s1734] sm:$0xf] %v1733
    %1736 = vst [vmem:[#allocation2] sm:$0xff] %v1731
    %1737 = vst [vmem:[#allocation3] sm:$0xff] %v1732
    // Predicated region
    $region38: #{tpu_custom_call.1} parent=1 // pred_check
      %p1738 = pneg %p83
    $region39: #{tpu_custom_call.1} parent=1 // pred_check_branch
      %1740 = sbr.rel (%p1738) target = $region41
    $region40: #{tpu_custom_call.1} parent=1 // pred_region
      %1741 = vst [vmem:[#allocation14] sm:$0xff] %v1731
      %1742 = vst [vmem:[#allocation16] sm:$0xff] %v1732
    $region41: #{tpu_custom_call.1} parent=1 // pred_fallthru
      _
    // Predicated region
    $region42: #{tpu_custom_call.1} parent=1 // pred_check
      _
    $region43: #{tpu_custom_call.1} parent=1 // pred_check_branch
      %1744 = sbr.rel (0) target = $region45
    $region44: #{tpu_custom_call.1} parent=1 // pred_region
      %1746 = vsyncadd [#allocation7], 0
      %s1747 = sshll.u32 [#allocation13], 4
      %s1748 = int_to_ptr.vmem [resolvable:$true] %s1747
      %s1749 = sshll.u32 %s4, 4
      %s1750 = int_to_ptr.hbm [resolvable:$true] %s1749
      %1755 = dma.vmem_to_hbm [thread:$0]  %s1748, 512, %s1750, [#allocation7], 64, 64, 4
    $region45: #{tpu_custom_call.1} parent=1 // pred_fallthru
      _
    // Predicated region
    $region46: #{tpu_custom_call.1} parent=1 // pred_check
      _
    $region47: #{tpu_custom_call.1} parent=1 // pred_check_branch
      %1757 = sbr.rel (0) target = $region49
    $region48: #{tpu_custom_call.1} parent=1 // pred_region
      %1759 = vsyncadd [#allocation15], 0
      %s1761 = sshll.u32 [#allocation14], 4
      %s1762 = int_to_ptr.vmem [resolvable:$true] %s1761
      %s1763 = sshll.u32 %s5, 4
      %s1764 = int_to_ptr.hbm [resolvable:$true] %s1763
      %1766 = dma.vmem_to_hbm [thread:$0]  %s1762, 128, %s1764, [#allocation15]
    $region49: #{tpu_custom_call.1} parent=1 // pred_fallthru
      _
    // Predicated region
    $region50: #{tpu_custom_call.1} parent=1 // pred_check
      _
    $region51: #{tpu_custom_call.1} parent=1 // pred_check_branch
      %1768 = sbr.rel (0) target = $region53
    $region52: #{tpu_custom_call.1} parent=1 // pred_region
      %1770 = vsyncadd [#allocation15], 0
      %s1772 = sshll.u32 [#allocation16], 4
      %s1773 = int_to_ptr.vmem [resolvable:$true] %s1772
      %s1774 = sshll.u32 %s6, 4
      %s1775 = int_to_ptr.hbm [resolvable:$true] %s1774
      %1777 = dma.vmem_to_hbm [thread:$0]  %s1773, 128, %s1775, [#allocation15]
    $region53: #{tpu_custom_call.1} parent=1 // pred_fallthru
      _
    // Predicated region
    $region54: #{tpu_custom_call.1} parent=1 // pred_check
      _
    $region55: #{tpu_custom_call.1} parent=1 // pred_check_branch
      %1779 = sbr.rel (0) target = $region57
    $region56: #{tpu_custom_call.1} parent=1 // pred_region
      %1781 = dma.done [#allocation7], 512
    $region57: #{tpu_custom_call.1} parent=1 // pred_fallthru
      _
    // Predicated region
    $region58: #{tpu_custom_call.1} parent=1 // pred_check
      _
    $region59: #{tpu_custom_call.1} parent=1 // pred_check_branch
      %1783 = sbr.rel (0) target = $region61
    $region60: #{tpu_custom_call.1} parent=1 // pred_region
      %1785 = dma.done [#allocation15], 128
    $region61: #{tpu_custom_call.1} parent=1 // pred_fallthru
      _
    // Predicated region
    $region62: #{tpu_custom_call.1} parent=1 // pred_check
      _
    $region63: #{tpu_custom_call.1} parent=1 // pred_check_branch
      %1787 = sbr.rel (0) target = $region65
    $region64: #{tpu_custom_call.1} parent=1 // pred_region
      %1789 = dma.done [#allocation15], 128
    $region65: #{tpu_custom_call.1} parent=1 // pred_fallthru
      _
    %1790 = vsyncpa [#allocation6], 1
    %1791 = vsyncpa [#allocation9], 1
    %1792 = vsyncpa [#allocation12], 1
    %1793 = vsyncpa [#allocation7], 1
    %1794 = vsyncpa [#allocation15], 1

</llo_original>
